<compile_context>
chip_gen: v5e
topology: v5e:2x2
jax: 0.10.0
libtpu: 0.0.40
codegen_flags: <defaults>
</compile_context>

<pallas_src>
import functools

import jax
import jax.numpy as jnp
from jax import lax
from jax.experimental import pallas as pl
from jax.experimental.pallas import tpu as pltpu

BN_EPS = 1e-5


def _bn_train(y, gamma, beta):
    """BatchNorm1d with per-call batch statistics (train mode, biased variance)."""
    mean = jnp.mean(y, axis=0, keepdims=True)
    var = jnp.mean(jnp.square(y - mean), axis=0, keepdims=True)
    return gamma * (y - mean) * lax.rsqrt(var + BN_EPS) + beta


# ---------------------------------------------------------------------------
# Single fused kernel: MLP embed -> bidirectional LSTM -> MLP head
# ---------------------------------------------------------------------------
def fused_bilstm_kernel(x_ref, mlp_w_ref, mlp_b_ref, mlp_g_ref, mlp_be_ref,
                        wih_ref, bih_ref, whh_ref,
                        l1w_ref, l1b_ref, l1g_ref, l1be_ref,
                        l2w_ref, l2b_ref, l2g_ref, l2be_ref,
                        l3w_ref, l3b_ref,
                        o_ref, *, bs, seq, hid):
    H = hid
    T = seq

    # --- Stage 1: embedding MLP: Linear -> ReLU -> BN (stats over N = bs*T rows) ---
    h = jnp.dot(x_ref[...], mlp_w_ref[...],
                preferred_element_type=jnp.float32) + mlp_b_ref[...]
    h = jnp.maximum(h, 0.0)
    h = _bn_train(h, mlp_g_ref[...], mlp_be_ref[...])                 # (N, E)

    # --- Stage 2: hoisted input projection for BOTH directions, biases folded in ---
    # One dense (N, E) x (E, 8H) matmul instead of 2*T tiny per-step matmuls.
    gx = jnp.dot(h, wih_ref[...],
                 preferred_element_type=jnp.float32) + bih_ref[...]   # (N, 8H)
    gx = gx.reshape(bs, T, 8 * H)                                     # batch-major rows

    whh = whh_ref[...]                    # (2H, 8H) block-diag [whh_f 0; 0 whh_b]

    h_cat = jnp.zeros((bs, 2 * H), jnp.float32)   # [h_fwd | h_bwd]
    c_f = jnp.zeros((bs, H), jnp.float32)
    c_b = jnp.zeros((bs, H), jnp.float32)

    # --- Stage 2b: recurrence, both directions per iteration, statically unrolled ---
    for t in range(T):
        # forward direction consumes step t, backward direction consumes step T-1-t
        g_in = jnp.concatenate([gx[:, t, 0:4 * H],
                                gx[:, T - 1 - t, 4 * H:8 * H]], axis=1)       # (bs, 8H)
        gates = g_in + jnp.dot(h_cat, whh, preferred_element_type=jnp.float32)

        i_f = jax.nn.sigmoid(gates[:, 0 * H:1 * H])
        f_f = jax.nn.sigmoid(gates[:, 1 * H:2 * H])
        g_f = jnp.tanh(gates[:, 2 * H:3 * H])
        o_f = jax.nn.sigmoid(gates[:, 3 * H:4 * H])
        i_b = jax.nn.sigmoid(gates[:, 4 * H:5 * H])
        f_b = jax.nn.sigmoid(gates[:, 5 * H:6 * H])
        g_b = jnp.tanh(gates[:, 6 * H:7 * H])
        o_b = jax.nn.sigmoid(gates[:, 7 * H:8 * H])

        c_f = f_f * c_f + i_f * g_f
        c_b = f_b * c_b + i_b * g_b
        h_f = o_f * jnp.tanh(c_f)
        h_b = o_b * jnp.tanh(c_b)
        h_cat = jnp.concatenate([h_f, h_b], axis=1)                   # (bs, 2H)

    # final hidden states: h_fwd after t=T-1, h_bwd after t=0  == cat([hn[0], hn[1]])
    emb = h_cat

    # --- Stage 3: head: MLP(2H->128) -> MLP(128->40) -> Linear(40->n_classes) ---
    z = jnp.dot(emb, l1w_ref[...], preferred_element_type=jnp.float32) + l1b_ref[...]
    z = _bn_train(jnp.maximum(z, 0.0), l1g_ref[...], l1be_ref[...])
    z = jnp.dot(z, l2w_ref[...], preferred_element_type=jnp.float32) + l2b_ref[...]
    z = _bn_train(jnp.maximum(z, 0.0), l2g_ref[...], l2be_ref[...])
    o_ref[...] = (jnp.dot(z, l3w_ref[...], preferred_element_type=jnp.float32)
                  + l3b_ref[...])


# ---------------------------------------------------------------------------
# One-time weight packing (do this at init, not per forward call)
# ---------------------------------------------------------------------------
def pack_params(params):
    hid = params["whh_f"].shape[0]
    packed = dict(params)
    # concat input-projection weights / biases for both directions -> (E, 8H), (1, 8H)
    packed["wih_fb"] = jnp.concatenate([params["wih_f"], params["wih_b"]], axis=1)
    packed["b_fb"] = jnp.concatenate([params["b_f"], params["b_b"]], axis=1)
    # block-diagonal recurrence weight -> (2H, 8H): [whh_f 0; 0 whh_b]
    whh = jnp.zeros((2 * hid, 8 * hid), jnp.float32)
    whh = whh.at[:hid, :4 * hid].set(params["whh_f"])
    whh = whh.at[hid:, 4 * hid:].set(params["whh_b"])
    packed["whh_bd"] = whh
    return packed


# ---------------------------------------------------------------------------
# Forward pass (single pallas_call)
# ---------------------------------------------------------------------------
def bilstm_forward(packed, x, bs):
    # bs corresponds to data.batch.max() + 1; passed statically to avoid a
    # device->host sync in the hot path.
    n = x.shape[0]
    assert n % bs == 0, (n, bs)
    seq = n // bs
    hid = packed["whh_f"].shape[0]
    n_classes = packed["lin3_w"].shape[1]

    kernel = functools.partial(fused_bilstm_kernel, bs=bs, seq=seq, hid=hid)
    n_inputs = 18
    return pl.pallas_call(
        kernel,
        out_shape=jax.ShapeDtypeStruct((bs, n_classes), jnp.float32),
        in_specs=[pl.BlockSpec(memory_space=pltpu.MemorySpace.VMEM)] * n_inputs,
        out_specs=pl.BlockSpec(memory_space=pltpu.MemorySpace.VMEM),
        compiler_params=pltpu.CompilerParams(vmem_limit_bytes=32 * 1024 * 1024),
        # TODO(synk): for production-size N / T, tile over N with a grid (two-pass BN)
        # and stream the sequence via pl.ANY + double-buffered DMA (v7x: 64 MiB VMEM).
    )(x,
      packed["mlp_w"], packed["mlp_b"], packed["mlp_gamma"], packed["mlp_beta"],
      packed["wih_fb"], packed["b_fb"], packed["whh_bd"],
      packed["lin1_w"], packed["lin1_b"], packed["lin1_gamma"], packed["lin1_beta"],
      packed["lin2_w"], packed["lin2_b"], packed["lin2_gamma"], packed["lin2_beta"],
      packed["lin3_w"], packed["lin3_b"])


# ---------------------------------------------------------------------------
# Parameter init (deterministic, shapes follow BiLSTM.__init__)
# ---------------------------------------------------------------------------
def init_params(key, input_size, emb, hid, n_classes):
    keys = iter(jax.random.split(key, 24))

    def w(shape, scale=0.1):
        return scale * jax.random.normal(next(keys), shape, jnp.float32)

    p = {}
    # mlp = Lin(input_size, emb) + ReLU + BN(emb)
    p["mlp_w"] = w((input_size, emb)); p["mlp_b"] = w((1, emb), 0.05)
    p["mlp_gamma"] = 1.0 + w((1, emb), 0.01); p["mlp_beta"] = w((1, emb), 0.01)
    # bidirectional LSTM(emb, hid)  (gate order i, f, g, o)
    p["wih_f"] = w((emb, 4 * hid)); p["whh_f"] = w((hid, 4 * hid)); p["b_f"] = w((1, 4 * hid), 0.05)
    p["wih_b"] = w((emb, 4 * hid)); p["whh_b"] = w((hid, 4 * hid)); p["b_b"] = w((1, 4 * hid), 0.05)
    # lin = MLP([2*hid, 128]) -> MLP([128, 40]) -> Lin(40, n_classes)
    p["lin1_w"] = w((2 * hid, 128)); p["lin1_b"] = w((1, 128), 0.05)
    p["lin1_gamma"] = 1.0 + w((1, 128), 0.01); p["lin1_beta"] = w((1, 128), 0.01)
    p["lin2_w"] = w((128, 40)); p["lin2_b"] = w((1, 40), 0.05)
    p["lin2_gamma"] = 1.0 + w((1, 40), 0.01); p["lin2_beta"] = w((1, 40), 0.01)
    p["lin3_w"] = w((40, n_classes)); p["lin3_b"] = w((1, n_classes), 0.05)
    return p


# ---------------------------------------------------------------------------
# Pure-JAX reference (for correctness check)
# ---------------------------------------------------------------------------
def ref_forward(params, x, bs):
    def lrbn(x_, w_, b_, g_, be_):
        y = jnp.maximum(x_ @ w_ + b_, 0.0)
        m = y.mean(0, keepdims=True)
        v = ((y - m) ** 2).mean(0, keepdims=True)
        return g_ * (y - m) / jnp.sqrt(v + BN_EPS) + be_

    h = lrbn(x, params["mlp_w"], params["mlp_b"], params["mlp_gamma"], params["mlp_beta"])
    xseq = h.reshape(bs, -1, h.shape[1])
    T = xseq.shape[1]
    H = params["whh_f"].shape[0]

    def run(wih, whh, b, rev):
        hh = jnp.zeros((bs, H), jnp.float32)
        cc = jnp.zeros((bs, H), jnp.float32)
        order = range(T - 1, -1, -1) if rev else range(T)
        for t in order:
            gates = xseq[:, t, :] @ wih + hh @ whh + b
            i = jax.nn.sigmoid(gates[:, 0:H]); f = jax.nn.sigmoid(gates[:, H:2 * H])
            g = jnp.tanh(gates[:, 2 * H:3 * H]); o = jax.nn.sigmoid(gates[:, 3 * H:4 * H])
            cc = f * cc + i * g
            hh = o * jnp.tanh(cc)
        return hh

    emb = jnp.concatenate(
        [run(params["wih_f"], params["whh_f"], params["b_f"], False),
         run(params["wih_b"], params["whh_b"], params["b_b"], True)], axis=1)
    z = lrbn(emb, params["lin1_w"], params["lin1_b"], params["lin1_gamma"], params["lin1_beta"])
    z = lrbn(z, params["lin2_w"], params["lin2_b"], params["lin2_gamma"], params["lin2_beta"])
    return z @ params["lin3_w"] + params["lin3_b"]


if __name__ == "__main__":
    INPUT_SIZE, EMB, HID, N_CLASSES = 16, 32, 32, 2
    BS, SEQ = 2, 8

    key = jax.random.PRNGKey(0)
    k_params, k_x = jax.random.split(key)
    params = init_params(k_params, INPUT_SIZE, EMB, HID, N_CLASSES)
    packed = pack_params(params)                     # one-time weight packing

    x = jax.random.normal(k_x, (BS * SEQ, INPUT_SIZE), jnp.float32)   # data.x
    batch = jnp.repeat(jnp.arange(BS, dtype=jnp.int32), SEQ)          # data.batch
    bs = BS   # == int(batch.max()) + 1, passed statically (no host sync)

    out = bilstm_forward(packed, x, bs)
    out = jax.block_until_ready(out)

    ref = ref_forward(params, x, bs)
    assert out.shape == (BS, N_CLASSES), out.shape
    assert jnp.allclose(out, ref, atol=5e-3, rtol=5e-3), (out, ref)

    print("KERNEL_OK")
</pallas_src>

<mosaic_0001>
module attributes {stable_mosaic.version = 11 : i64} {
  func.func @fused_bilstm_kernel(%arg0: memref<16x16xf32, #tpu.memory_space<vmem>>, %arg1: memref<16x32xf32, #tpu.memory_space<vmem>>, %arg2: memref<1x32xf32, #tpu.memory_space<vmem>>, %arg3: memref<1x32xf32, #tpu.memory_space<vmem>>, %arg4: memref<1x32xf32, #tpu.memory_space<vmem>>, %arg5: memref<32x256xf32, #tpu.memory_space<vmem>>, %arg6: memref<1x256xf32, #tpu.memory_space<vmem>>, %arg7: memref<64x256xf32, #tpu.memory_space<vmem>>, %arg8: memref<64x128xf32, #tpu.memory_space<vmem>>, %arg9: memref<1x128xf32, #tpu.memory_space<vmem>>, %arg10: memref<1x128xf32, #tpu.memory_space<vmem>>, %arg11: memref<1x128xf32, #tpu.memory_space<vmem>>, %arg12: memref<128x40xf32, #tpu.memory_space<vmem>>, %arg13: memref<1x40xf32, #tpu.memory_space<vmem>>, %arg14: memref<1x40xf32, #tpu.memory_space<vmem>>, %arg15: memref<1x40xf32, #tpu.memory_space<vmem>>, %arg16: memref<40x2xf32, #tpu.memory_space<vmem>>, %arg17: memref<1x2xf32, #tpu.memory_space<vmem>>, %arg18: memref<2x2xf32, #tpu.memory_space<vmem>>) attributes {dimension_semantics = [], scalar_prefetch = 0 : i64, scratch_operands = 0 : i64, tpu.core_type = #tpu.core_type<tc>} {
    %c0 = arith.constant 0 : index
    %c0_0 = arith.constant 0 : index
    %0 = vector.load %arg0[%c0, %c0_0] : memref<16x16xf32, #tpu.memory_space<vmem>>, vector<16x16xf32>
    %c0_1 = arith.constant 0 : index
    %c0_2 = arith.constant 0 : index
    %1 = vector.load %arg1[%c0_1, %c0_2] : memref<16x32xf32, #tpu.memory_space<vmem>>, vector<16x32xf32>
    %cst = arith.constant dense<0.000000e+00> : vector<16x32xf32>
    %2 = tpu.matmul %0, %1, %cst {dimension_numbers = #tpu.dot_dimension_numbers<[1], [0], [0], [1], [0, 0, 1, 1], [], []>} : vector<16x16xf32>, vector<16x32xf32>, vector<16x32xf32> -> vector<16x32xf32>
    %c0_3 = arith.constant 0 : index
    %c0_4 = arith.constant 0 : index
    %3 = vector.load %arg2[%c0_3, %c0_4] : memref<1x32xf32, #tpu.memory_space<vmem>>, vector<1x32xf32>
    %4 = vector.broadcast %3 : vector<1x32xf32> to vector<16x32xf32>
    %5 = arith.addf %2, %4 : vector<16x32xf32>
    %cst_5 = arith.constant 0.000000e+00 : f32
    %6 = vector.broadcast %cst_5 : f32 to vector<16x32xf32>
    %7 = arith.maximumf %5, %6 : vector<16x32xf32>
    %c0_6 = arith.constant 0 : index
    %c0_7 = arith.constant 0 : index
    %8 = vector.load %arg3[%c0_6, %c0_7] : memref<1x32xf32, #tpu.memory_space<vmem>>, vector<1x32xf32>
    %c0_8 = arith.constant 0 : index
    %c0_9 = arith.constant 0 : index
    %9 = vector.load %arg4[%c0_8, %c0_9] : memref<1x32xf32, #tpu.memory_space<vmem>>, vector<1x32xf32>
    %cst_10 = arith.constant dense<0.000000e+00> : vector<32xf32>
    %10 = vector.multi_reduction <add>, %7, %cst_10 [0] : vector<16x32xf32> to vector<32xf32>
    %11 = vector.shape_cast %10 : vector<32xf32> to vector<1x32xf32>
    %cst_11 = arith.constant 1.600000e+01 : f32
    %12 = vector.broadcast %cst_11 : f32 to vector<1x32xf32>
    %13 = arith.divf %11, %12 : vector<1x32xf32>
    %14 = vector.broadcast %13 : vector<1x32xf32> to vector<16x32xf32>
    %15 = arith.subf %7, %14 : vector<16x32xf32>
    %16 = arith.mulf %15, %15 : vector<16x32xf32>
    %cst_12 = arith.constant dense<0.000000e+00> : vector<32xf32>
    %17 = vector.multi_reduction <add>, %16, %cst_12 [0] : vector<16x32xf32> to vector<32xf32>
    %18 = vector.shape_cast %17 : vector<32xf32> to vector<1x32xf32>
    %cst_13 = arith.constant 1.600000e+01 : f32
    %19 = vector.broadcast %cst_13 : f32 to vector<1x32xf32>
    %20 = arith.divf %18, %19 : vector<1x32xf32>
    %21 = vector.broadcast %13 : vector<1x32xf32> to vector<16x32xf32>
    %22 = arith.subf %7, %21 : vector<16x32xf32>
    %23 = vector.broadcast %8 : vector<1x32xf32> to vector<16x32xf32>
    %24 = arith.mulf %23, %22 : vector<16x32xf32>
    %cst_14 = arith.constant 9.99999974E-6 : f32
    %25 = vector.broadcast %cst_14 : f32 to vector<1x32xf32>
    %26 = arith.addf %20, %25 : vector<1x32xf32>
    %27 = math.rsqrt %26 : vector<1x32xf32>
    %28 = vector.broadcast %27 : vector<1x32xf32> to vector<16x32xf32>
    %29 = arith.mulf %24, %28 : vector<16x32xf32>
    %30 = vector.broadcast %9 : vector<1x32xf32> to vector<16x32xf32>
    %31 = arith.addf %29, %30 : vector<16x32xf32>
    %c0_15 = arith.constant 0 : index
    %c0_16 = arith.constant 0 : index
    %32 = vector.load %arg5[%c0_15, %c0_16] : memref<32x256xf32, #tpu.memory_space<vmem>>, vector<32x256xf32>
    %cst_17 = arith.constant dense<0.000000e+00> : vector<16x256xf32>
    %33 = tpu.matmul %31, %32, %cst_17 {dimension_numbers = #tpu.dot_dimension_numbers<[1], [0], [0], [1], [0, 0, 1, 1], [], []>} : vector<16x32xf32>, vector<32x256xf32>, vector<16x256xf32> -> vector<16x256xf32>
    %c0_18 = arith.constant 0 : index
    %c0_19 = arith.constant 0 : index
    %34 = vector.load %arg6[%c0_18, %c0_19] : memref<1x256xf32, #tpu.memory_space<vmem>>, vector<1x256xf32>
    %35 = vector.broadcast %34 : vector<1x256xf32> to vector<16x256xf32>
    %36 = arith.addf %33, %35 : vector<16x256xf32>
    %37 = vector.shape_cast %36 : vector<16x256xf32> to vector<2x8x256xf32>
    %c0_20 = arith.constant 0 : index
    %c0_21 = arith.constant 0 : index
    %38 = vector.load %arg7[%c0_20, %c0_21] : memref<64x256xf32, #tpu.memory_space<vmem>>, vector<64x256xf32>
    %cst_22 = arith.constant 0.000000e+00 : f32
    %39 = vector.broadcast %cst_22 : f32 to vector<2x64xf32>
    %cst_23 = arith.constant 0.000000e+00 : f32
    %40 = vector.broadcast %cst_23 : f32 to vector<2x32xf32>
    %cst_24 = arith.constant 0.000000e+00 : f32
    %41 = vector.broadcast %cst_24 : f32 to vector<2x32xf32>
    %42 = vector.extract_strided_slice %37 {offsets = [0, 0, 0], sizes = [2, 1, 128], strides = [1, 1, 1]} : vector<2x8x256xf32> to vector<2x1x128xf32>
    %43 = vector.shape_cast %42 : vector<2x1x128xf32> to vector<2x128xf32>
    %44 = vector.extract_strided_slice %37 {offsets = [0, 7, 128], sizes = [2, 1, 128], strides = [1, 1, 1]} : vector<2x8x256xf32> to vector<2x1x128xf32>
    %45 = vector.shape_cast %44 : vector<2x1x128xf32> to vector<2x128xf32>
    %46 = tpu.concatenate %43, %45 in 1 : vector<2x128xf32>, vector<2x128xf32> -> vector<2x256xf32>
    %cst_25 = arith.constant dense<0.000000e+00> : vector<2x256xf32>
    %47 = tpu.matmul %39, %38, %cst_25 {dimension_numbers = #tpu.dot_dimension_numbers<[1], [0], [0], [1], [0, 0, 1, 1], [], []>} : vector<2x64xf32>, vector<64x256xf32>, vector<2x256xf32> -> vector<2x256xf32>
    %48 = arith.addf %46, %47 : vector<2x256xf32>
    %49 = vector.extract_strided_slice %48 {offsets = [0, 0], sizes = [2, 32], strides = [1, 1]} : vector<2x256xf32> to vector<2x32xf32>
    %50 = arith.negf %49 : vector<2x32xf32>
    %51 = math.exp %50 : vector<2x32xf32>
    %cst_26 = arith.constant 1.000000e+00 : f32
    %52 = vector.broadcast %cst_26 : f32 to vector<2x32xf32>
    %53 = arith.addf %52, %51 : vector<2x32xf32>
    %54 = arith.divf %52, %53 : vector<2x32xf32>
    %55 = vector.extract_strided_slice %48 {offsets = [0, 32], sizes = [2, 32], strides = [1, 1]} : vector<2x256xf32> to vector<2x32xf32>
    %56 = arith.negf %55 : vector<2x32xf32>
    %57 = math.exp %56 : vector<2x32xf32>
    %cst_27 = arith.constant 1.000000e+00 : f32
    %58 = vector.broadcast %cst_27 : f32 to vector<2x32xf32>
    %59 = arith.addf %58, %57 : vector<2x32xf32>
    %60 = arith.divf %58, %59 : vector<2x32xf32>
    %61 = vector.extract_strided_slice %48 {offsets = [0, 64], sizes = [2, 32], strides = [1, 1]} : vector<2x256xf32> to vector<2x32xf32>
    %62 = math.tanh %61 : vector<2x32xf32>
    %63 = vector.extract_strided_slice %48 {offsets = [0, 96], sizes = [2, 32], strides = [1, 1]} : vector<2x256xf32> to vector<2x32xf32>
    %64 = arith.negf %63 : vector<2x32xf32>
    %65 = math.exp %64 : vector<2x32xf32>
    %cst_28 = arith.constant 1.000000e+00 : f32
    %66 = vector.broadcast %cst_28 : f32 to vector<2x32xf32>
    %67 = arith.addf %66, %65 : vector<2x32xf32>
    %68 = arith.divf %66, %67 : vector<2x32xf32>
    %69 = vector.extract_strided_slice %48 {offsets = [0, 128], sizes = [2, 32], strides = [1, 1]} : vector<2x256xf32> to vector<2x32xf32>
    %70 = arith.negf %69 : vector<2x32xf32>
    %71 = math.exp %70 : vector<2x32xf32>
    %cst_29 = arith.constant 1.000000e+00 : f32
    %72 = vector.broadcast %cst_29 : f32 to vector<2x32xf32>
    %73 = arith.addf %72, %71 : vector<2x32xf32>
    %74 = arith.divf %72, %73 : vector<2x32xf32>
    %75 = vector.extract_strided_slice %48 {offsets = [0, 160], sizes = [2, 32], strides = [1, 1]} : vector<2x256xf32> to vector<2x32xf32>
    %76 = arith.negf %75 : vector<2x32xf32>
    %77 = math.exp %76 : vector<2x32xf32>
    %cst_30 = arith.constant 1.000000e+00 : f32
    %78 = vector.broadcast %cst_30 : f32 to vector<2x32xf32>
    %79 = arith.addf %78, %77 : vector<2x32xf32>
    %80 = arith.divf %78, %79 : vector<2x32xf32>
    %81 = vector.extract_strided_slice %48 {offsets = [0, 192], sizes = [2, 32], strides = [1, 1]} : vector<2x256xf32> to vector<2x32xf32>
    %82 = math.tanh %81 : vector<2x32xf32>
    %83 = vector.extract_strided_slice %48 {offsets = [0, 224], sizes = [2, 32], strides = [1, 1]} : vector<2x256xf32> to vector<2x32xf32>
    %84 = arith.negf %83 : vector<2x32xf32>
    %85 = math.exp %84 : vector<2x32xf32>
    %cst_31 = arith.constant 1.000000e+00 : f32
    %86 = vector.broadcast %cst_31 : f32 to vector<2x32xf32>
    %87 = arith.addf %86, %85 : vector<2x32xf32>
    %88 = arith.divf %86, %87 : vector<2x32xf32>
    %89 = arith.mulf %60, %40 : vector<2x32xf32>
    %90 = arith.mulf %54, %62 : vector<2x32xf32>
    %91 = arith.addf %89, %90 : vector<2x32xf32>
    %92 = arith.mulf %80, %41 : vector<2x32xf32>
    %93 = arith.mulf %74, %82 : vector<2x32xf32>
    %94 = arith.addf %92, %93 : vector<2x32xf32>
    %95 = math.tanh %91 : vector<2x32xf32>
    %96 = arith.mulf %68, %95 : vector<2x32xf32>
    %97 = math.tanh %94 : vector<2x32xf32>
    %98 = arith.mulf %88, %97 : vector<2x32xf32>
    %99 = tpu.concatenate %96, %98 in 1 : vector<2x32xf32>, vector<2x32xf32> -> vector<2x64xf32>
    %100 = vector.extract_strided_slice %37 {offsets = [0, 1, 0], sizes = [2, 1, 128], strides = [1, 1, 1]} : vector<2x8x256xf32> to vector<2x1x128xf32>
    %101 = vector.shape_cast %100 : vector<2x1x128xf32> to vector<2x128xf32>
    %102 = vector.extract_strided_slice %37 {offsets = [0, 6, 128], sizes = [2, 1, 128], strides = [1, 1, 1]} : vector<2x8x256xf32> to vector<2x1x128xf32>
    %103 = vector.shape_cast %102 : vector<2x1x128xf32> to vector<2x128xf32>
    %104 = tpu.concatenate %101, %103 in 1 : vector<2x128xf32>, vector<2x128xf32> -> vector<2x256xf32>
    %cst_32 = arith.constant dense<0.000000e+00> : vector<2x256xf32>
    %105 = tpu.matmul %99, %38, %cst_32 {dimension_numbers = #tpu.dot_dimension_numbers<[1], [0], [0], [1], [0, 0, 1, 1], [], []>} : vector<2x64xf32>, vector<64x256xf32>, vector<2x256xf32> -> vector<2x256xf32>
    %106 = arith.addf %104, %105 : vector<2x256xf32>
    %107 = vector.extract_strided_slice %106 {offsets = [0, 0], sizes = [2, 32], strides = [1, 1]} : vector<2x256xf32> to vector<2x32xf32>
    %108 = arith.negf %107 : vector<2x32xf32>
    %109 = math.exp %108 : vector<2x32xf32>
    %cst_33 = arith.constant 1.000000e+00 : f32
    %110 = vector.broadcast %cst_33 : f32 to vector<2x32xf32>
    %111 = arith.addf %110, %109 : vector<2x32xf32>
    %112 = arith.divf %110, %111 : vector<2x32xf32>
    %113 = vector.extract_strided_slice %106 {offsets = [0, 32], sizes = [2, 32], strides = [1, 1]} : vector<2x256xf32> to vector<2x32xf32>
    %114 = arith.negf %113 : vector<2x32xf32>
    %115 = math.exp %114 : vector<2x32xf32>
    %cst_34 = arith.constant 1.000000e+00 : f32
    %116 = vector.broadcast %cst_34 : f32 to vector<2x32xf32>
    %117 = arith.addf %116, %115 : vector<2x32xf32>
    %118 = arith.divf %116, %117 : vector<2x32xf32>
    %119 = vector.extract_strided_slice %106 {offsets = [0, 64], sizes = [2, 32], strides = [1, 1]} : vector<2x256xf32> to vector<2x32xf32>
    %120 = math.tanh %119 : vector<2x32xf32>
    %121 = vector.extract_strided_slice %106 {offsets = [0, 96], sizes = [2, 32], strides = [1, 1]} : vector<2x256xf32> to vector<2x32xf32>
    %122 = arith.negf %121 : vector<2x32xf32>
    %123 = math.exp %122 : vector<2x32xf32>
    %cst_35 = arith.constant 1.000000e+00 : f32
    %124 = vector.broadcast %cst_35 : f32 to vector<2x32xf32>
    %125 = arith.addf %124, %123 : vector<2x32xf32>
    %126 = arith.divf %124, %125 : vector<2x32xf32>
    %127 = vector.extract_strided_slice %106 {offsets = [0, 128], sizes = [2, 32], strides = [1, 1]} : vector<2x256xf32> to vector<2x32xf32>
    %128 = arith.negf %127 : vector<2x32xf32>
    %129 = math.exp %128 : vector<2x32xf32>
    %cst_36 = arith.constant 1.000000e+00 : f32
    %130 = vector.broadcast %cst_36 : f32 to vector<2x32xf32>
    %131 = arith.addf %130, %129 : vector<2x32xf32>
    %132 = arith.divf %130, %131 : vector<2x32xf32>
    %133 = vector.extract_strided_slice %106 {offsets = [0, 160], sizes = [2, 32], strides = [1, 1]} : vector<2x256xf32> to vector<2x32xf32>
    %134 = arith.negf %133 : vector<2x32xf32>
    %135 = math.exp %134 : vector<2x32xf32>
    %cst_37 = arith.constant 1.000000e+00 : f32
    %136 = vector.broadcast %cst_37 : f32 to vector<2x32xf32>
    %137 = arith.addf %136, %135 : vector<2x32xf32>
    %138 = arith.divf %136, %137 : vector<2x32xf32>
    %139 = vector.extract_strided_slice %106 {offsets = [0, 192], sizes = [2, 32], strides = [1, 1]} : vector<2x256xf32> to vector<2x32xf32>
    %140 = math.tanh %139 : vector<2x32xf32>
    %141 = vector.extract_strided_slice %106 {offsets = [0, 224], sizes = [2, 32], strides = [1, 1]} : vector<2x256xf32> to vector<2x32xf32>
    %142 = arith.negf %141 : vector<2x32xf32>
    %143 = math.exp %142 : vector<2x32xf32>
    %cst_38 = arith.constant 1.000000e+00 : f32
    %144 = vector.broadcast %cst_38 : f32 to vector<2x32xf32>
    %145 = arith.addf %144, %143 : vector<2x32xf32>
    %146 = arith.divf %144, %145 : vector<2x32xf32>
    %147 = arith.mulf %118, %91 : vector<2x32xf32>
    %148 = arith.mulf %112, %120 : vector<2x32xf32>
    %149 = arith.addf %147, %148 : vector<2x32xf32>
    %150 = arith.mulf %138, %94 : vector<2x32xf32>
    %151 = arith.mulf %132, %140 : vector<2x32xf32>
    %152 = arith.addf %150, %151 : vector<2x32xf32>
    %153 = math.tanh %149 : vector<2x32xf32>
    %154 = arith.mulf %126, %153 : vector<2x32xf32>
    %155 = math.tanh %152 : vector<2x32xf32>
    %156 = arith.mulf %146, %155 : vector<2x32xf32>
    %157 = tpu.concatenate %154, %156 in 1 : vector<2x32xf32>, vector<2x32xf32> -> vector<2x64xf32>
    %158 = vector.extract_strided_slice %37 {offsets = [0, 2, 0], sizes = [2, 1, 128], strides = [1, 1, 1]} : vector<2x8x256xf32> to vector<2x1x128xf32>
    %159 = vector.shape_cast %158 : vector<2x1x128xf32> to vector<2x128xf32>
    %160 = vector.extract_strided_slice %37 {offsets = [0, 5, 128], sizes = [2, 1, 128], strides = [1, 1, 1]} : vector<2x8x256xf32> to vector<2x1x128xf32>
    %161 = vector.shape_cast %160 : vector<2x1x128xf32> to vector<2x128xf32>
    %162 = tpu.concatenate %159, %161 in 1 : vector<2x128xf32>, vector<2x128xf32> -> vector<2x256xf32>
    %cst_39 = arith.constant dense<0.000000e+00> : vector<2x256xf32>
    %163 = tpu.matmul %157, %38, %cst_39 {dimension_numbers = #tpu.dot_dimension_numbers<[1], [0], [0], [1], [0, 0, 1, 1], [], []>} : vector<2x64xf32>, vector<64x256xf32>, vector<2x256xf32> -> vector<2x256xf32>
    %164 = arith.addf %162, %163 : vector<2x256xf32>
    %165 = vector.extract_strided_slice %164 {offsets = [0, 0], sizes = [2, 32], strides = [1, 1]} : vector<2x256xf32> to vector<2x32xf32>
    %166 = arith.negf %165 : vector<2x32xf32>
    %167 = math.exp %166 : vector<2x32xf32>
    %cst_40 = arith.constant 1.000000e+00 : f32
    %168 = vector.broadcast %cst_40 : f32 to vector<2x32xf32>
    %169 = arith.addf %168, %167 : vector<2x32xf32>
    %170 = arith.divf %168, %169 : vector<2x32xf32>
    %171 = vector.extract_strided_slice %164 {offsets = [0, 32], sizes = [2, 32], strides = [1, 1]} : vector<2x256xf32> to vector<2x32xf32>
    %172 = arith.negf %171 : vector<2x32xf32>
    %173 = math.exp %172 : vector<2x32xf32>
    %cst_41 = arith.constant 1.000000e+00 : f32
    %174 = vector.broadcast %cst_41 : f32 to vector<2x32xf32>
    %175 = arith.addf %174, %173 : vector<2x32xf32>
    %176 = arith.divf %174, %175 : vector<2x32xf32>
    %177 = vector.extract_strided_slice %164 {offsets = [0, 64], sizes = [2, 32], strides = [1, 1]} : vector<2x256xf32> to vector<2x32xf32>
    %178 = math.tanh %177 : vector<2x32xf32>
    %179 = vector.extract_strided_slice %164 {offsets = [0, 96], sizes = [2, 32], strides = [1, 1]} : vector<2x256xf32> to vector<2x32xf32>
    %180 = arith.negf %179 : vector<2x32xf32>
    %181 = math.exp %180 : vector<2x32xf32>
    %cst_42 = arith.constant 1.000000e+00 : f32
    %182 = vector.broadcast %cst_42 : f32 to vector<2x32xf32>
    %183 = arith.addf %182, %181 : vector<2x32xf32>
    %184 = arith.divf %182, %183 : vector<2x32xf32>
    %185 = vector.extract_strided_slice %164 {offsets = [0, 128], sizes = [2, 32], strides = [1, 1]} : vector<2x256xf32> to vector<2x32xf32>
    %186 = arith.negf %185 : vector<2x32xf32>
    %187 = math.exp %186 : vector<2x32xf32>
    %cst_43 = arith.constant 1.000000e+00 : f32
    %188 = vector.broadcast %cst_43 : f32 to vector<2x32xf32>
    %189 = arith.addf %188, %187 : vector<2x32xf32>
    %190 = arith.divf %188, %189 : vector<2x32xf32>
    %191 = vector.extract_strided_slice %164 {offsets = [0, 160], sizes = [2, 32], strides = [1, 1]} : vector<2x256xf32> to vector<2x32xf32>
    %192 = arith.negf %191 : vector<2x32xf32>
    %193 = math.exp %192 : vector<2x32xf32>
    %cst_44 = arith.constant 1.000000e+00 : f32
    %194 = vector.broadcast %cst_44 : f32 to vector<2x32xf32>
    %195 = arith.addf %194, %193 : vector<2x32xf32>
    %196 = arith.divf %194, %195 : vector<2x32xf32>
    %197 = vector.extract_strided_slice %164 {offsets = [0, 192], sizes = [2, 32], strides = [1, 1]} : vector<2x256xf32> to vector<2x32xf32>
    %198 = math.tanh %197 : vector<2x32xf32>
    %199 = vector.extract_strided_slice %164 {offsets = [0, 224], sizes = [2, 32], strides = [1, 1]} : vector<2x256xf32> to vector<2x32xf32>
    %200 = arith.negf %199 : vector<2x32xf32>
    %201 = math.exp %200 : vector<2x32xf32>
    %cst_45 = arith.constant 1.000000e+00 : f32
    %202 = vector.broadcast %cst_45 : f32 to vector<2x32xf32>
    %203 = arith.addf %202, %201 : vector<2x32xf32>
    %204 = arith.divf %202, %203 : vector<2x32xf32>
    %205 = arith.mulf %176, %149 : vector<2x32xf32>
    %206 = arith.mulf %170, %178 : vector<2x32xf32>
    %207 = arith.addf %205, %206 : vector<2x32xf32>
    %208 = arith.mulf %196, %152 : vector<2x32xf32>
    %209 = arith.mulf %190, %198 : vector<2x32xf32>
    %210 = arith.addf %208, %209 : vector<2x32xf32>
    %211 = math.tanh %207 : vector<2x32xf32>
    %212 = arith.mulf %184, %211 : vector<2x32xf32>
    %213 = math.tanh %210 : vector<2x32xf32>
    %214 = arith.mulf %204, %213 : vector<2x32xf32>
    %215 = tpu.concatenate %212, %214 in 1 : vector<2x32xf32>, vector<2x32xf32> -> vector<2x64xf32>
    %216 = vector.extract_strided_slice %37 {offsets = [0, 3, 0], sizes = [2, 1, 128], strides = [1, 1, 1]} : vector<2x8x256xf32> to vector<2x1x128xf32>
    %217 = vector.shape_cast %216 : vector<2x1x128xf32> to vector<2x128xf32>
    %218 = vector.extract_strided_slice %37 {offsets = [0, 4, 128], sizes = [2, 1, 128], strides = [1, 1, 1]} : vector<2x8x256xf32> to vector<2x1x128xf32>
    %219 = vector.shape_cast %218 : vector<2x1x128xf32> to vector<2x128xf32>
    %220 = tpu.concatenate %217, %219 in 1 : vector<2x128xf32>, vector<2x128xf32> -> vector<2x256xf32>
    %cst_46 = arith.constant dense<0.000000e+00> : vector<2x256xf32>
    %221 = tpu.matmul %215, %38, %cst_46 {dimension_numbers = #tpu.dot_dimension_numbers<[1], [0], [0], [1], [0, 0, 1, 1], [], []>} : vector<2x64xf32>, vector<64x256xf32>, vector<2x256xf32> -> vector<2x256xf32>
    %222 = arith.addf %220, %221 : vector<2x256xf32>
    %223 = vector.extract_strided_slice %222 {offsets = [0, 0], sizes = [2, 32], strides = [1, 1]} : vector<2x256xf32> to vector<2x32xf32>
    %224 = arith.negf %223 : vector<2x32xf32>
    %225 = math.exp %224 : vector<2x32xf32>
    %cst_47 = arith.constant 1.000000e+00 : f32
    %226 = vector.broadcast %cst_47 : f32 to vector<2x32xf32>
    %227 = arith.addf %226, %225 : vector<2x32xf32>
    %228 = arith.divf %226, %227 : vector<2x32xf32>
    %229 = vector.extract_strided_slice %222 {offsets = [0, 32], sizes = [2, 32], strides = [1, 1]} : vector<2x256xf32> to vector<2x32xf32>
    %230 = arith.negf %229 : vector<2x32xf32>
    %231 = math.exp %230 : vector<2x32xf32>
    %cst_48 = arith.constant 1.000000e+00 : f32
    %232 = vector.broadcast %cst_48 : f32 to vector<2x32xf32>
    %233 = arith.addf %232, %231 : vector<2x32xf32>
    %234 = arith.divf %232, %233 : vector<2x32xf32>
    %235 = vector.extract_strided_slice %222 {offsets = [0, 64], sizes = [2, 32], strides = [1, 1]} : vector<2x256xf32> to vector<2x32xf32>
    %236 = math.tanh %235 : vector<2x32xf32>
    %237 = vector.extract_strided_slice %222 {offsets = [0, 96], sizes = [2, 32], strides = [1, 1]} : vector<2x256xf32> to vector<2x32xf32>
    %238 = arith.negf %237 : vector<2x32xf32>
    %239 = math.exp %238 : vector<2x32xf32>
    %cst_49 = arith.constant 1.000000e+00 : f32
    %240 = vector.broadcast %cst_49 : f32 to vector<2x32xf32>
    %241 = arith.addf %240, %239 : vector<2x32xf32>
    %242 = arith.divf %240, %241 : vector<2x32xf32>
    %243 = vector.extract_strided_slice %222 {offsets = [0, 128], sizes = [2, 32], strides = [1, 1]} : vector<2x256xf32> to vector<2x32xf32>
    %244 = arith.negf %243 : vector<2x32xf32>
    %245 = math.exp %244 : vector<2x32xf32>
    %cst_50 = arith.constant 1.000000e+00 : f32
    %246 = vector.broadcast %cst_50 : f32 to vector<2x32xf32>
    %247 = arith.addf %246, %245 : vector<2x32xf32>
    %248 = arith.divf %246, %247 : vector<2x32xf32>
    %249 = vector.extract_strided_slice %222 {offsets = [0, 160], sizes = [2, 32], strides = [1, 1]} : vector<2x256xf32> to vector<2x32xf32>
    %250 = arith.negf %249 : vector<2x32xf32>
    %251 = math.exp %250 : vector<2x32xf32>
    %cst_51 = arith.constant 1.000000e+00 : f32
    %252 = vector.broadcast %cst_51 : f32 to vector<2x32xf32>
    %253 = arith.addf %252, %251 : vector<2x32xf32>
    %254 = arith.divf %252, %253 : vector<2x32xf32>
    %255 = vector.extract_strided_slice %222 {offsets = [0, 192], sizes = [2, 32], strides = [1, 1]} : vector<2x256xf32> to vector<2x32xf32>
    %256 = math.tanh %255 : vector<2x32xf32>
    %257 = vector.extract_strided_slice %222 {offsets = [0, 224], sizes = [2, 32], strides = [1, 1]} : vector<2x256xf32> to vector<2x32xf32>
    %258 = arith.negf %257 : vector<2x32xf32>
    %259 = math.exp %258 : vector<2x32xf32>
    %cst_52 = arith.constant 1.000000e+00 : f32
    %260 = vector.broadcast %cst_52 : f32 to vector<2x32xf32>
    %261 = arith.addf %260, %259 : vector<2x32xf32>
    %262 = arith.divf %260, %261 : vector<2x32xf32>
    %263 = arith.mulf %234, %207 : vector<2x32xf32>
    %264 = arith.mulf %228, %236 : vector<2x32xf32>
    %265 = arith.addf %263, %264 : vector<2x32xf32>
    %266 = arith.mulf %254, %210 : vector<2x32xf32>
    %267 = arith.mulf %248, %256 : vector<2x32xf32>
    %268 = arith.addf %266, %267 : vector<2x32xf32>
    %269 = math.tanh %265 : vector<2x32xf32>
    %270 = arith.mulf %242, %269 : vector<2x32xf32>
    %271 = math.tanh %268 : vector<2x32xf32>
    %272 = arith.mulf %262, %271 : vector<2x32xf32>
    %273 = tpu.concatenate %270, %272 in 1 : vector<2x32xf32>, vector<2x32xf32> -> vector<2x64xf32>
    %274 = vector.extract_strided_slice %37 {offsets = [0, 4, 0], sizes = [2, 1, 128], strides = [1, 1, 1]} : vector<2x8x256xf32> to vector<2x1x128xf32>
    %275 = vector.shape_cast %274 : vector<2x1x128xf32> to vector<2x128xf32>
    %276 = vector.extract_strided_slice %37 {offsets = [0, 3, 128], sizes = [2, 1, 128], strides = [1, 1, 1]} : vector<2x8x256xf32> to vector<2x1x128xf32>
    %277 = vector.shape_cast %276 : vector<2x1x128xf32> to vector<2x128xf32>
    %278 = tpu.concatenate %275, %277 in 1 : vector<2x128xf32>, vector<2x128xf32> -> vector<2x256xf32>
    %cst_53 = arith.constant dense<0.000000e+00> : vector<2x256xf32>
    %279 = tpu.matmul %273, %38, %cst_53 {dimension_numbers = #tpu.dot_dimension_numbers<[1], [0], [0], [1], [0, 0, 1, 1], [], []>} : vector<2x64xf32>, vector<64x256xf32>, vector<2x256xf32> -> vector<2x256xf32>
    %280 = arith.addf %278, %279 : vector<2x256xf32>
    %281 = vector.extract_strided_slice %280 {offsets = [0, 0], sizes = [2, 32], strides = [1, 1]} : vector<2x256xf32> to vector<2x32xf32>
    %282 = arith.negf %281 : vector<2x32xf32>
    %283 = math.exp %282 : vector<2x32xf32>
    %cst_54 = arith.constant 1.000000e+00 : f32
    %284 = vector.broadcast %cst_54 : f32 to vector<2x32xf32>
    %285 = arith.addf %284, %283 : vector<2x32xf32>
    %286 = arith.divf %284, %285 : vector<2x32xf32>
    %287 = vector.extract_strided_slice %280 {offsets = [0, 32], sizes = [2, 32], strides = [1, 1]} : vector<2x256xf32> to vector<2x32xf32>
    %288 = arith.negf %287 : vector<2x32xf32>
    %289 = math.exp %288 : vector<2x32xf32>
    %cst_55 = arith.constant 1.000000e+00 : f32
    %290 = vector.broadcast %cst_55 : f32 to vector<2x32xf32>
    %291 = arith.addf %290, %289 : vector<2x32xf32>
    %292 = arith.divf %290, %291 : vector<2x32xf32>
    %293 = vector.extract_strided_slice %280 {offsets = [0, 64], sizes = [2, 32], strides = [1, 1]} : vector<2x256xf32> to vector<2x32xf32>
    %294 = math.tanh %293 : vector<2x32xf32>
    %295 = vector.extract_strided_slice %280 {offsets = [0, 96], sizes = [2, 32], strides = [1, 1]} : vector<2x256xf32> to vector<2x32xf32>
    %296 = arith.negf %295 : vector<2x32xf32>
    %297 = math.exp %296 : vector<2x32xf32>
    %cst_56 = arith.constant 1.000000e+00 : f32
    %298 = vector.broadcast %cst_56 : f32 to vector<2x32xf32>
    %299 = arith.addf %298, %297 : vector<2x32xf32>
    %300 = arith.divf %298, %299 : vector<2x32xf32>
    %301 = vector.extract_strided_slice %280 {offsets = [0, 128], sizes = [2, 32], strides = [1, 1]} : vector<2x256xf32> to vector<2x32xf32>
    %302 = arith.negf %301 : vector<2x32xf32>
    %303 = math.exp %302 : vector<2x32xf32>
    %cst_57 = arith.constant 1.000000e+00 : f32
    %304 = vector.broadcast %cst_57 : f32 to vector<2x32xf32>
    %305 = arith.addf %304, %303 : vector<2x32xf32>
    %306 = arith.divf %304, %305 : vector<2x32xf32>
    %307 = vector.extract_strided_slice %280 {offsets = [0, 160], sizes = [2, 32], strides = [1, 1]} : vector<2x256xf32> to vector<2x32xf32>
    %308 = arith.negf %307 : vector<2x32xf32>
    %309 = math.exp %308 : vector<2x32xf32>
    %cst_58 = arith.constant 1.000000e+00 : f32
    %310 = vector.broadcast %cst_58 : f32 to vector<2x32xf32>
    %311 = arith.addf %310, %309 : vector<2x32xf32>
    %312 = arith.divf %310, %311 : vector<2x32xf32>
    %313 = vector.extract_strided_slice %280 {offsets = [0, 192], sizes = [2, 32], strides = [1, 1]} : vector<2x256xf32> to vector<2x32xf32>
    %314 = math.tanh %313 : vector<2x32xf32>
    %315 = vector.extract_strided_slice %280 {offsets = [0, 224], sizes = [2, 32], strides = [1, 1]} : vector<2x256xf32> to vector<2x32xf32>
    %316 = arith.negf %315 : vector<2x32xf32>
    %317 = math.exp %316 : vector<2x32xf32>
    %cst_59 = arith.constant 1.000000e+00 : f32
    %318 = vector.broadcast %cst_59 : f32 to vector<2x32xf32>
    %319 = arith.addf %318, %317 : vector<2x32xf32>
    %320 = arith.divf %318, %319 : vector<2x32xf32>
    %321 = arith.mulf %292, %265 : vector<2x32xf32>
    %322 = arith.mulf %286, %294 : vector<2x32xf32>
    %323 = arith.addf %321, %322 : vector<2x32xf32>
    %324 = arith.mulf %312, %268 : vector<2x32xf32>
    %325 = arith.mulf %306, %314 : vector<2x32xf32>
    %326 = arith.addf %324, %325 : vector<2x32xf32>
    %327 = math.tanh %323 : vector<2x32xf32>
    %328 = arith.mulf %300, %327 : vector<2x32xf32>
    %329 = math.tanh %326 : vector<2x32xf32>
    %330 = arith.mulf %320, %329 : vector<2x32xf32>
    %331 = tpu.concatenate %328, %330 in 1 : vector<2x32xf32>, vector<2x32xf32> -> vector<2x64xf32>
    %332 = vector.extract_strided_slice %37 {offsets = [0, 5, 0], sizes = [2, 1, 128], strides = [1, 1, 1]} : vector<2x8x256xf32> to vector<2x1x128xf32>
    %333 = vector.shape_cast %332 : vector<2x1x128xf32> to vector<2x128xf32>
    %334 = vector.extract_strided_slice %37 {offsets = [0, 2, 128], sizes = [2, 1, 128], strides = [1, 1, 1]} : vector<2x8x256xf32> to vector<2x1x128xf32>
    %335 = vector.shape_cast %334 : vector<2x1x128xf32> to vector<2x128xf32>
    %336 = tpu.concatenate %333, %335 in 1 : vector<2x128xf32>, vector<2x128xf32> -> vector<2x256xf32>
    %cst_60 = arith.constant dense<0.000000e+00> : vector<2x256xf32>
    %337 = tpu.matmul %331, %38, %cst_60 {dimension_numbers = #tpu.dot_dimension_numbers<[1], [0], [0], [1], [0, 0, 1, 1], [], []>} : vector<2x64xf32>, vector<64x256xf32>, vector<2x256xf32> -> vector<2x256xf32>
    %338 = arith.addf %336, %337 : vector<2x256xf32>
    %339 = vector.extract_strided_slice %338 {offsets = [0, 0], sizes = [2, 32], strides = [1, 1]} : vector<2x256xf32> to vector<2x32xf32>
    %340 = arith.negf %339 : vector<2x32xf32>
    %341 = math.exp %340 : vector<2x32xf32>
    %cst_61 = arith.constant 1.000000e+00 : f32
    %342 = vector.broadcast %cst_61 : f32 to vector<2x32xf32>
    %343 = arith.addf %342, %341 : vector<2x32xf32>
    %344 = arith.divf %342, %343 : vector<2x32xf32>
    %345 = vector.extract_strided_slice %338 {offsets = [0, 32], sizes = [2, 32], strides = [1, 1]} : vector<2x256xf32> to vector<2x32xf32>
    %346 = arith.negf %345 : vector<2x32xf32>
    %347 = math.exp %346 : vector<2x32xf32>
    %cst_62 = arith.constant 1.000000e+00 : f32
    %348 = vector.broadcast %cst_62 : f32 to vector<2x32xf32>
    %349 = arith.addf %348, %347 : vector<2x32xf32>
    %350 = arith.divf %348, %349 : vector<2x32xf32>
    %351 = vector.extract_strided_slice %338 {offsets = [0, 64], sizes = [2, 32], strides = [1, 1]} : vector<2x256xf32> to vector<2x32xf32>
    %352 = math.tanh %351 : vector<2x32xf32>
    %353 = vector.extract_strided_slice %338 {offsets = [0, 96], sizes = [2, 32], strides = [1, 1]} : vector<2x256xf32> to vector<2x32xf32>
    %354 = arith.negf %353 : vector<2x32xf32>
    %355 = math.exp %354 : vector<2x32xf32>
    %cst_63 = arith.constant 1.000000e+00 : f32
    %356 = vector.broadcast %cst_63 : f32 to vector<2x32xf32>
    %357 = arith.addf %356, %355 : vector<2x32xf32>
    %358 = arith.divf %356, %357 : vector<2x32xf32>
    %359 = vector.extract_strided_slice %338 {offsets = [0, 128], sizes = [2, 32], strides = [1, 1]} : vector<2x256xf32> to vector<2x32xf32>
    %360 = arith.negf %359 : vector<2x32xf32>
    %361 = math.exp %360 : vector<2x32xf32>
    %cst_64 = arith.constant 1.000000e+00 : f32
    %362 = vector.broadcast %cst_64 : f32 to vector<2x32xf32>
    %363 = arith.addf %362, %361 : vector<2x32xf32>
    %364 = arith.divf %362, %363 : vector<2x32xf32>
    %365 = vector.extract_strided_slice %338 {offsets = [0, 160], sizes = [2, 32], strides = [1, 1]} : vector<2x256xf32> to vector<2x32xf32>
    %366 = arith.negf %365 : vector<2x32xf32>
    %367 = math.exp %366 : vector<2x32xf32>
    %cst_65 = arith.constant 1.000000e+00 : f32
    %368 = vector.broadcast %cst_65 : f32 to vector<2x32xf32>
    %369 = arith.addf %368, %367 : vector<2x32xf32>
    %370 = arith.divf %368, %369 : vector<2x32xf32>
    %371 = vector.extract_strided_slice %338 {offsets = [0, 192], sizes = [2, 32], strides = [1, 1]} : vector<2x256xf32> to vector<2x32xf32>
    %372 = math.tanh %371 : vector<2x32xf32>
    %373 = vector.extract_strided_slice %338 {offsets = [0, 224], sizes = [2, 32], strides = [1, 1]} : vector<2x256xf32> to vector<2x32xf32>
    %374 = arith.negf %373 : vector<2x32xf32>
    %375 = math.exp %374 : vector<2x32xf32>
    %cst_66 = arith.constant 1.000000e+00 : f32
    %376 = vector.broadcast %cst_66 : f32 to vector<2x32xf32>
    %377 = arith.addf %376, %375 : vector<2x32xf32>
    %378 = arith.divf %376, %377 : vector<2x32xf32>
    %379 = arith.mulf %350, %323 : vector<2x32xf32>
    %380 = arith.mulf %344, %352 : vector<2x32xf32>
    %381 = arith.addf %379, %380 : vector<2x32xf32>
    %382 = arith.mulf %370, %326 : vector<2x32xf32>
    %383 = arith.mulf %364, %372 : vector<2x32xf32>
    %384 = arith.addf %382, %383 : vector<2x32xf32>
    %385 = math.tanh %381 : vector<2x32xf32>
    %386 = arith.mulf %358, %385 : vector<2x32xf32>
    %387 = math.tanh %384 : vector<2x32xf32>
    %388 = arith.mulf %378, %387 : vector<2x32xf32>
    %389 = tpu.concatenate %386, %388 in 1 : vector<2x32xf32>, vector<2x32xf32> -> vector<2x64xf32>
    %390 = vector.extract_strided_slice %37 {offsets = [0, 6, 0], sizes = [2, 1, 128], strides = [1, 1, 1]} : vector<2x8x256xf32> to vector<2x1x128xf32>
    %391 = vector.shape_cast %390 : vector<2x1x128xf32> to vector<2x128xf32>
    %392 = vector.extract_strided_slice %37 {offsets = [0, 1, 128], sizes = [2, 1, 128], strides = [1, 1, 1]} : vector<2x8x256xf32> to vector<2x1x128xf32>
    %393 = vector.shape_cast %392 : vector<2x1x128xf32> to vector<2x128xf32>
    %394 = tpu.concatenate %391, %393 in 1 : vector<2x128xf32>, vector<2x128xf32> -> vector<2x256xf32>
    %cst_67 = arith.constant dense<0.000000e+00> : vector<2x256xf32>
    %395 = tpu.matmul %389, %38, %cst_67 {dimension_numbers = #tpu.dot_dimension_numbers<[1], [0], [0], [1], [0, 0, 1, 1], [], []>} : vector<2x64xf32>, vector<64x256xf32>, vector<2x256xf32> -> vector<2x256xf32>
    %396 = arith.addf %394, %395 : vector<2x256xf32>
    %397 = vector.extract_strided_slice %396 {offsets = [0, 0], sizes = [2, 32], strides = [1, 1]} : vector<2x256xf32> to vector<2x32xf32>
    %398 = arith.negf %397 : vector<2x32xf32>
    %399 = math.exp %398 : vector<2x32xf32>
    %cst_68 = arith.constant 1.000000e+00 : f32
    %400 = vector.broadcast %cst_68 : f32 to vector<2x32xf32>
    %401 = arith.addf %400, %399 : vector<2x32xf32>
    %402 = arith.divf %400, %401 : vector<2x32xf32>
    %403 = vector.extract_strided_slice %396 {offsets = [0, 32], sizes = [2, 32], strides = [1, 1]} : vector<2x256xf32> to vector<2x32xf32>
    %404 = arith.negf %403 : vector<2x32xf32>
    %405 = math.exp %404 : vector<2x32xf32>
    %cst_69 = arith.constant 1.000000e+00 : f32
    %406 = vector.broadcast %cst_69 : f32 to vector<2x32xf32>
    %407 = arith.addf %406, %405 : vector<2x32xf32>
    %408 = arith.divf %406, %407 : vector<2x32xf32>
    %409 = vector.extract_strided_slice %396 {offsets = [0, 64], sizes = [2, 32], strides = [1, 1]} : vector<2x256xf32> to vector<2x32xf32>
    %410 = math.tanh %409 : vector<2x32xf32>
    %411 = vector.extract_strided_slice %396 {offsets = [0, 96], sizes = [2, 32], strides = [1, 1]} : vector<2x256xf32> to vector<2x32xf32>
    %412 = arith.negf %411 : vector<2x32xf32>
    %413 = math.exp %412 : vector<2x32xf32>
    %cst_70 = arith.constant 1.000000e+00 : f32
    %414 = vector.broadcast %cst_70 : f32 to vector<2x32xf32>
    %415 = arith.addf %414, %413 : vector<2x32xf32>
    %416 = arith.divf %414, %415 : vector<2x32xf32>
    %417 = vector.extract_strided_slice %396 {offsets = [0, 128], sizes = [2, 32], strides = [1, 1]} : vector<2x256xf32> to vector<2x32xf32>
    %418 = arith.negf %417 : vector<2x32xf32>
    %419 = math.exp %418 : vector<2x32xf32>
    %cst_71 = arith.constant 1.000000e+00 : f32
    %420 = vector.broadcast %cst_71 : f32 to vector<2x32xf32>
    %421 = arith.addf %420, %419 : vector<2x32xf32>
    %422 = arith.divf %420, %421 : vector<2x32xf32>
    %423 = vector.extract_strided_slice %396 {offsets = [0, 160], sizes = [2, 32], strides = [1, 1]} : vector<2x256xf32> to vector<2x32xf32>
    %424 = arith.negf %423 : vector<2x32xf32>
    %425 = math.exp %424 : vector<2x32xf32>
    %cst_72 = arith.constant 1.000000e+00 : f32
    %426 = vector.broadcast %cst_72 : f32 to vector<2x32xf32>
    %427 = arith.addf %426, %425 : vector<2x32xf32>
    %428 = arith.divf %426, %427 : vector<2x32xf32>
    %429 = vector.extract_strided_slice %396 {offsets = [0, 192], sizes = [2, 32], strides = [1, 1]} : vector<2x256xf32> to vector<2x32xf32>
    %430 = math.tanh %429 : vector<2x32xf32>
    %431 = vector.extract_strided_slice %396 {offsets = [0, 224], sizes = [2, 32], strides = [1, 1]} : vector<2x256xf32> to vector<2x32xf32>
    %432 = arith.negf %431 : vector<2x32xf32>
    %433 = math.exp %432 : vector<2x32xf32>
    %cst_73 = arith.constant 1.000000e+00 : f32
    %434 = vector.broadcast %cst_73 : f32 to vector<2x32xf32>
    %435 = arith.addf %434, %433 : vector<2x32xf32>
    %436 = arith.divf %434, %435 : vector<2x32xf32>
    %437 = arith.mulf %408, %381 : vector<2x32xf32>
    %438 = arith.mulf %402, %410 : vector<2x32xf32>
    %439 = arith.addf %437, %438 : vector<2x32xf32>
    %440 = arith.mulf %428, %384 : vector<2x32xf32>
    %441 = arith.mulf %422, %430 : vector<2x32xf32>
    %442 = arith.addf %440, %441 : vector<2x32xf32>
    %443 = math.tanh %439 : vector<2x32xf32>
    %444 = arith.mulf %416, %443 : vector<2x32xf32>
    %445 = math.tanh %442 : vector<2x32xf32>
    %446 = arith.mulf %436, %445 : vector<2x32xf32>
    %447 = tpu.concatenate %444, %446 in 1 : vector<2x32xf32>, vector<2x32xf32> -> vector<2x64xf32>
    %448 = vector.extract_strided_slice %37 {offsets = [0, 7, 0], sizes = [2, 1, 128], strides = [1, 1, 1]} : vector<2x8x256xf32> to vector<2x1x128xf32>
    %449 = vector.shape_cast %448 : vector<2x1x128xf32> to vector<2x128xf32>
    %450 = vector.extract_strided_slice %37 {offsets = [0, 0, 128], sizes = [2, 1, 128], strides = [1, 1, 1]} : vector<2x8x256xf32> to vector<2x1x128xf32>
    %451 = vector.shape_cast %450 : vector<2x1x128xf32> to vector<2x128xf32>
    %452 = tpu.concatenate %449, %451 in 1 : vector<2x128xf32>, vector<2x128xf32> -> vector<2x256xf32>
    %cst_74 = arith.constant dense<0.000000e+00> : vector<2x256xf32>
    %453 = tpu.matmul %447, %38, %cst_74 {dimension_numbers = #tpu.dot_dimension_numbers<[1], [0], [0], [1], [0, 0, 1, 1], [], []>} : vector<2x64xf32>, vector<64x256xf32>, vector<2x256xf32> -> vector<2x256xf32>
    %454 = arith.addf %452, %453 : vector<2x256xf32>
    %455 = vector.extract_strided_slice %454 {offsets = [0, 0], sizes = [2, 32], strides = [1, 1]} : vector<2x256xf32> to vector<2x32xf32>
    %456 = arith.negf %455 : vector<2x32xf32>
    %457 = math.exp %456 : vector<2x32xf32>
    %cst_75 = arith.constant 1.000000e+00 : f32
    %458 = vector.broadcast %cst_75 : f32 to vector<2x32xf32>
    %459 = arith.addf %458, %457 : vector<2x32xf32>
    %460 = arith.divf %458, %459 : vector<2x32xf32>
    %461 = vector.extract_strided_slice %454 {offsets = [0, 32], sizes = [2, 32], strides = [1, 1]} : vector<2x256xf32> to vector<2x32xf32>
    %462 = arith.negf %461 : vector<2x32xf32>
    %463 = math.exp %462 : vector<2x32xf32>
    %cst_76 = arith.constant 1.000000e+00 : f32
    %464 = vector.broadcast %cst_76 : f32 to vector<2x32xf32>
    %465 = arith.addf %464, %463 : vector<2x32xf32>
    %466 = arith.divf %464, %465 : vector<2x32xf32>
    %467 = vector.extract_strided_slice %454 {offsets = [0, 64], sizes = [2, 32], strides = [1, 1]} : vector<2x256xf32> to vector<2x32xf32>
    %468 = math.tanh %467 : vector<2x32xf32>
    %469 = vector.extract_strided_slice %454 {offsets = [0, 96], sizes = [2, 32], strides = [1, 1]} : vector<2x256xf32> to vector<2x32xf32>
    %470 = arith.negf %469 : vector<2x32xf32>
    %471 = math.exp %470 : vector<2x32xf32>
    %cst_77 = arith.constant 1.000000e+00 : f32
    %472 = vector.broadcast %cst_77 : f32 to vector<2x32xf32>
    %473 = arith.addf %472, %471 : vector<2x32xf32>
    %474 = arith.divf %472, %473 : vector<2x32xf32>
    %475 = vector.extract_strided_slice %454 {offsets = [0, 128], sizes = [2, 32], strides = [1, 1]} : vector<2x256xf32> to vector<2x32xf32>
    %476 = arith.negf %475 : vector<2x32xf32>
    %477 = math.exp %476 : vector<2x32xf32>
    %cst_78 = arith.constant 1.000000e+00 : f32
    %478 = vector.broadcast %cst_78 : f32 to vector<2x32xf32>
    %479 = arith.addf %478, %477 : vector<2x32xf32>
    %480 = arith.divf %478, %479 : vector<2x32xf32>
    %481 = vector.extract_strided_slice %454 {offsets = [0, 160], sizes = [2, 32], strides = [1, 1]} : vector<2x256xf32> to vector<2x32xf32>
    %482 = arith.negf %481 : vector<2x32xf32>
    %483 = math.exp %482 : vector<2x32xf32>
    %cst_79 = arith.constant 1.000000e+00 : f32
    %484 = vector.broadcast %cst_79 : f32 to vector<2x32xf32>
    %485 = arith.addf %484, %483 : vector<2x32xf32>
    %486 = arith.divf %484, %485 : vector<2x32xf32>
    %487 = vector.extract_strided_slice %454 {offsets = [0, 192], sizes = [2, 32], strides = [1, 1]} : vector<2x256xf32> to vector<2x32xf32>
    %488 = math.tanh %487 : vector<2x32xf32>
    %489 = vector.extract_strided_slice %454 {offsets = [0, 224], sizes = [2, 32], strides = [1, 1]} : vector<2x256xf32> to vector<2x32xf32>
    %490 = arith.negf %489 : vector<2x32xf32>
    %491 = math.exp %490 : vector<2x32xf32>
    %cst_80 = arith.constant 1.000000e+00 : f32
    %492 = vector.broadcast %cst_80 : f32 to vector<2x32xf32>
    %493 = arith.addf %492, %491 : vector<2x32xf32>
    %494 = arith.divf %492, %493 : vector<2x32xf32>
    %495 = arith.mulf %466, %439 : vector<2x32xf32>
    %496 = arith.mulf %460, %468 : vector<2x32xf32>
    %497 = arith.addf %495, %496 : vector<2x32xf32>
    %498 = arith.mulf %486, %442 : vector<2x32xf32>
    %499 = arith.mulf %480, %488 : vector<2x32xf32>
    %500 = arith.addf %498, %499 : vector<2x32xf32>
    %501 = math.tanh %497 : vector<2x32xf32>
    %502 = arith.mulf %474, %501 : vector<2x32xf32>
    %503 = math.tanh %500 : vector<2x32xf32>
    %504 = arith.mulf %494, %503 : vector<2x32xf32>
    %505 = tpu.concatenate %502, %504 in 1 : vector<2x32xf32>, vector<2x32xf32> -> vector<2x64xf32>
    %c0_81 = arith.constant 0 : index
    %c0_82 = arith.constant 0 : index
    %506 = vector.load %arg8[%c0_81, %c0_82] : memref<64x128xf32, #tpu.memory_space<vmem>>, vector<64x128xf32>
    %cst_83 = arith.constant dense<0.000000e+00> : vector<2x128xf32>
    %507 = tpu.matmul %505, %506, %cst_83 {dimension_numbers = #tpu.dot_dimension_numbers<[1], [0], [0], [1], [0, 0, 1, 1], [], []>} : vector<2x64xf32>, vector<64x128xf32>, vector<2x128xf32> -> vector<2x128xf32>
    %c0_84 = arith.constant 0 : index
    %c0_85 = arith.constant 0 : index
    %508 = vector.load %arg9[%c0_84, %c0_85] : memref<1x128xf32, #tpu.memory_space<vmem>>, vector<1x128xf32>
    %509 = vector.broadcast %508 : vector<1x128xf32> to vector<2x128xf32>
    %510 = arith.addf %507, %509 : vector<2x128xf32>
    %cst_86 = arith.constant 0.000000e+00 : f32
    %511 = vector.broadcast %cst_86 : f32 to vector<2x128xf32>
    %512 = arith.maximumf %510, %511 : vector<2x128xf32>
    %c0_87 = arith.constant 0 : index
    %c0_88 = arith.constant 0 : index
    %513 = vector.load %arg10[%c0_87, %c0_88] : memref<1x128xf32, #tpu.memory_space<vmem>>, vector<1x128xf32>
    %c0_89 = arith.constant 0 : index
    %c0_90 = arith.constant 0 : index
    %514 = vector.load %arg11[%c0_89, %c0_90] : memref<1x128xf32, #tpu.memory_space<vmem>>, vector<1x128xf32>
    %cst_91 = arith.constant dense<0.000000e+00> : vector<128xf32>
    %515 = vector.multi_reduction <add>, %512, %cst_91 [0] : vector<2x128xf32> to vector<128xf32>
    %516 = vector.shape_cast %515 : vector<128xf32> to vector<1x128xf32>
    %cst_92 = arith.constant 2.000000e+00 : f32
    %517 = vector.broadcast %cst_92 : f32 to vector<1x128xf32>
    %518 = arith.divf %516, %517 : vector<1x128xf32>
    %519 = vector.broadcast %518 : vector<1x128xf32> to vector<2x128xf32>
    %520 = arith.subf %512, %519 : vector<2x128xf32>
    %521 = arith.mulf %520, %520 : vector<2x128xf32>
    %cst_93 = arith.constant dense<0.000000e+00> : vector<128xf32>
    %522 = vector.multi_reduction <add>, %521, %cst_93 [0] : vector<2x128xf32> to vector<128xf32>
    %523 = vector.shape_cast %522 : vector<128xf32> to vector<1x128xf32>
    %cst_94 = arith.constant 2.000000e+00 : f32
    %524 = vector.broadcast %cst_94 : f32 to vector<1x128xf32>
    %525 = arith.divf %523, %524 : vector<1x128xf32>
    %526 = vector.broadcast %518 : vector<1x128xf32> to vector<2x128xf32>
    %527 = arith.subf %512, %526 : vector<2x128xf32>
    %528 = vector.broadcast %513 : vector<1x128xf32> to vector<2x128xf32>
    %529 = arith.mulf %528, %527 : vector<2x128xf32>
    %cst_95 = arith.constant 9.99999974E-6 : f32
    %530 = vector.broadcast %cst_95 : f32 to vector<1x128xf32>
    %531 = arith.addf %525, %530 : vector<1x128xf32>
    %532 = math.rsqrt %531 : vector<1x128xf32>
    %533 = vector.broadcast %532 : vector<1x128xf32> to vector<2x128xf32>
    %534 = arith.mulf %529, %533 : vector<2x128xf32>
    %535 = vector.broadcast %514 : vector<1x128xf32> to vector<2x128xf32>
    %536 = arith.addf %534, %535 : vector<2x128xf32>
    %c0_96 = arith.constant 0 : index
    %c0_97 = arith.constant 0 : index
    %537 = vector.load %arg12[%c0_96, %c0_97] : memref<128x40xf32, #tpu.memory_space<vmem>>, vector<128x40xf32>
    %cst_98 = arith.constant dense<0.000000e+00> : vector<2x40xf32>
    %538 = tpu.matmul %536, %537, %cst_98 {dimension_numbers = #tpu.dot_dimension_numbers<[1], [0], [0], [1], [0, 0, 1, 1], [], []>} : vector<2x128xf32>, vector<128x40xf32>, vector<2x40xf32> -> vector<2x40xf32>
    %c0_99 = arith.constant 0 : index
    %c0_100 = arith.constant 0 : index
    %539 = vector.load %arg13[%c0_99, %c0_100] : memref<1x40xf32, #tpu.memory_space<vmem>>, vector<1x40xf32>
    %540 = vector.broadcast %539 : vector<1x40xf32> to vector<2x40xf32>
    %541 = arith.addf %538, %540 : vector<2x40xf32>
    %cst_101 = arith.constant 0.000000e+00 : f32
    %542 = vector.broadcast %cst_101 : f32 to vector<2x40xf32>
    %543 = arith.maximumf %541, %542 : vector<2x40xf32>
    %c0_102 = arith.constant 0 : index
    %c0_103 = arith.constant 0 : index
    %544 = vector.load %arg14[%c0_102, %c0_103] : memref<1x40xf32, #tpu.memory_space<vmem>>, vector<1x40xf32>
    %c0_104 = arith.constant 0 : index
    %c0_105 = arith.constant 0 : index
    %545 = vector.load %arg15[%c0_104, %c0_105] : memref<1x40xf32, #tpu.memory_space<vmem>>, vector<1x40xf32>
    %cst_106 = arith.constant dense<0.000000e+00> : vector<40xf32>
    %546 = vector.multi_reduction <add>, %543, %cst_106 [0] : vector<2x40xf32> to vector<40xf32>
    %547 = vector.shape_cast %546 : vector<40xf32> to vector<1x40xf32>
    %cst_107 = arith.constant 2.000000e+00 : f32
    %548 = vector.broadcast %cst_107 : f32 to vector<1x40xf32>
    %549 = arith.divf %547, %548 : vector<1x40xf32>
    %550 = vector.broadcast %549 : vector<1x40xf32> to vector<2x40xf32>
    %551 = arith.subf %543, %550 : vector<2x40xf32>
    %552 = arith.mulf %551, %551 : vector<2x40xf32>
    %cst_108 = arith.constant dense<0.000000e+00> : vector<40xf32>
    %553 = vector.multi_reduction <add>, %552, %cst_108 [0] : vector<2x40xf32> to vector<40xf32>
    %554 = vector.shape_cast %553 : vector<40xf32> to vector<1x40xf32>
    %cst_109 = arith.constant 2.000000e+00 : f32
    %555 = vector.broadcast %cst_109 : f32 to vector<1x40xf32>
    %556 = arith.divf %554, %555 : vector<1x40xf32>
    %557 = vector.broadcast %549 : vector<1x40xf32> to vector<2x40xf32>
    %558 = arith.subf %543, %557 : vector<2x40xf32>
    %559 = vector.broadcast %544 : vector<1x40xf32> to vector<2x40xf32>
    %560 = arith.mulf %559, %558 : vector<2x40xf32>
    %cst_110 = arith.constant 9.99999974E-6 : f32
    %561 = vector.broadcast %cst_110 : f32 to vector<1x40xf32>
    %562 = arith.addf %556, %561 : vector<1x40xf32>
    %563 = math.rsqrt %562 : vector<1x40xf32>
    %564 = vector.broadcast %563 : vector<1x40xf32> to vector<2x40xf32>
    %565 = arith.mulf %560, %564 : vector<2x40xf32>
    %566 = vector.broadcast %545 : vector<1x40xf32> to vector<2x40xf32>
    %567 = arith.addf %565, %566 : vector<2x40xf32>
    %c0_111 = arith.constant 0 : index
    %c0_112 = arith.constant 0 : index
    %568 = vector.load %arg16[%c0_111, %c0_112] : memref<40x2xf32, #tpu.memory_space<vmem>>, vector<40x2xf32>
    %cst_113 = arith.constant dense<0.000000e+00> : vector<2x2xf32>
    %569 = tpu.matmul %567, %568, %cst_113 {dimension_numbers = #tpu.dot_dimension_numbers<[1], [0], [0], [1], [0, 0, 1, 1], [], []>} : vector<2x40xf32>, vector<40x2xf32>, vector<2x2xf32> -> vector<2x2xf32>
    %c0_114 = arith.constant 0 : index
    %c0_115 = arith.constant 0 : index
    %570 = vector.load %arg17[%c0_114, %c0_115] : memref<1x2xf32, #tpu.memory_space<vmem>>, vector<1x2xf32>
    %571 = vector.broadcast %570 : vector<1x2xf32> to vector<2x2xf32>
    %572 = arith.addf %569, %571 : vector<2x2xf32>
    %c0_116 = arith.constant 0 : index
    %c0_117 = arith.constant 0 : index
    %573 = vector.load %arg18[%c0_116, %c0_117] : memref<2x2xf32, #tpu.memory_space<vmem>>, vector<2x2xf32>
    tpu.vector_store %arg18[%c0_116, %c0_117], %572 {strides = array<i32>} : memref<2x2xf32, #tpu.memory_space<vmem>>, vector<2x2xf32>,
    return
  }
}

</mosaic_0001>

<llo_original>
// kernel: tpu_custom_call.1
$region0: #{tpu_custom_call.1}
  #allocation0 [shape = 'u32[]', space=smem, size = 0x4, offset = 0x4, fixed_abs, tag = 'smem constant byte address 0x4 - core index']
  #allocation1 [shape = 'u32[72,128]{1,0:T(1,128)}', space=vmem, size = 0x9000, scoped, tag = 'internal scratch']
  %s0 = inlined_call_operand.vmem [shape: f32[16,16], index: 0, kind: input, shape index: {}]
  %s1 = inlined_call_operand.vmem [shape: f32[16,32], index: 1, kind: input, shape index: {}]
  %s2 = inlined_call_operand.vmem [shape: f32[1,32], index: 2, kind: input, shape index: {}]
  %s3 = inlined_call_operand.vmem [shape: f32[1,32], index: 3, kind: input, shape index: {}]
  %s4 = inlined_call_operand.vmem [shape: f32[1,32], index: 4, kind: input, shape index: {}]
  %s5 = inlined_call_operand.hbm [shape: f32[32,256], index: 5, kind: input, shape index: {}]
  %s6 = inlined_call_operand.vmem [shape: f32[1,256], index: 6, kind: input, shape index: {}]
  %s7 = inlined_call_operand.vmem [shape: f32[64,256], index: 7, kind: input, shape index: {}]
  %s8 = inlined_call_operand.hbm [shape: f32[64,128], index: 8, kind: input, shape index: {}]
  %s9 = inlined_call_operand.vmem [shape: f32[1,128], index: 9, kind: input, shape index: {}]
  %s10 = inlined_call_operand.vmem [shape: f32[1,128], index: 10, kind: input, shape index: {}]
  %s11 = inlined_call_operand.vmem [shape: f32[1,128], index: 11, kind: input, shape index: {}]
  %s12 = inlined_call_operand.vmem [shape: f32[128,40], index: 12, kind: input, shape index: {}]
  %s13 = inlined_call_operand.vmem [shape: f32[1,40], index: 13, kind: input, shape index: {}]
  %s14 = inlined_call_operand.vmem [shape: f32[1,40], index: 14, kind: input, shape index: {}]
  %s15 = inlined_call_operand.vmem [shape: f32[1,40], index: 15, kind: input, shape index: {}]
  %s16 = inlined_call_operand.vmem [shape: f32[40,2], index: 16, kind: input, shape index: {}]
  %s17 = inlined_call_operand.vmem [shape: f32[1,2], index: 17, kind: input, shape index: {}]
  %s18 = inlined_call_operand.hbm [shape: f32[2,2], index: 18, kind: output, shape index: {}]
  %s19 = sld [smem:[#allocation0]]
  $region90: #{tpu_custom_call.1} parent=0
    _
  %s21 = ssub.s32 1, %s19
  %s22 = scalar_select 0, %s21, %s19
  $region1: #{tpu_custom_call.1} parent=0
    #allocation2 [shape = 'u8[32768]{0}', space=vmem, size = 0x8000, scoped, tag = 'input window, operand 5, single buffered']
    #allocation3 [shape = 's32[1]{0}', space=sflag, size = 0x4, scoped, tag = 'scoped memory for tpu_custom_call.1']
    #allocation4 [shape = 's32[1]{0}', space=sflag, size = 0x4, scoped, tag = 'scoped memory for tpu_custom_call.1']
    #allocation5 [shape = 'u8[32768]{0}', space=vmem, size = 0x8000, scoped, tag = 'input window, operand 8, single buffered']
    #allocation6 [shape = 's32[1]{0}', space=sflag, size = 0x4, scoped, tag = 'scoped memory for tpu_custom_call.1']
    #allocation7 [shape = 'u8[1024]{0}', space=vmem, size = 0x400, scoped, tag = 'output window, operand 0, single buffered']
    %23 = vsyncpa [#allocation3], 0
    %24 = vsyncpa [#allocation6], 0
    %25 = vsyncpa [#allocation4], 0
    // Predicated region
    $region2: #{tpu_custom_call.1} parent=1 // pred_check
      _
    $region3: #{tpu_custom_call.1} parent=1 // pred_check_branch
      %27 = sbr.rel (0) target = $region5
    $region4: #{tpu_custom_call.1} parent=1 // pred_region
      _
    $region5: #{tpu_custom_call.1} parent=1 // pred_fallthru
      _
    // Predicated region
    $region6: #{tpu_custom_call.1} parent=1 // pred_check
      _
    $region7: #{tpu_custom_call.1} parent=1 // pred_check_branch
      %29 = sbr.rel (0) target = $region9
    $region8: #{tpu_custom_call.1} parent=1 // pred_region
      _
    $region9: #{tpu_custom_call.1} parent=1 // pred_fallthru
      _
    // Predicated region
    $region10: #{tpu_custom_call.1} parent=1 // pred_check
      _
    $region11: #{tpu_custom_call.1} parent=1 // pred_check_branch
      %31 = sbr.rel (0) target = $region13
    $region12: #{tpu_custom_call.1} parent=1 // pred_region
      _
    $region13: #{tpu_custom_call.1} parent=1 // pred_fallthru
      _
    // Predicated region
    $region14: #{tpu_custom_call.1} parent=1 // pred_check
      _
    $region15: #{tpu_custom_call.1} parent=1 // pred_check_branch
      %33 = sbr.rel (0) target = $region17
    $region16: #{tpu_custom_call.1} parent=1 // pred_region
      _
    $region17: #{tpu_custom_call.1} parent=1 // pred_fallthru
      _
    // Predicated region
    $region18: #{tpu_custom_call.1} parent=1 // pred_check
      _
    $region19: #{tpu_custom_call.1} parent=1 // pred_check_branch
      %35 = sbr.rel (0) target = $region21
    $region20: #{tpu_custom_call.1} parent=1 // pred_region
      _
    $region21: #{tpu_custom_call.1} parent=1 // pred_fallthru
      _
    // Predicated region
    $region22: #{tpu_custom_call.1} parent=1 // pred_check
      _
    $region23: #{tpu_custom_call.1} parent=1 // pred_check_branch
      %37 = sbr.rel (0) target = $region25
    $region24: #{tpu_custom_call.1} parent=1 // pred_region
      %39 = vsyncadd [#allocation3], 0
      %s40 = sshll.u32 %s5, 4
      %s41 = int_to_ptr.hbm [resolvable:$true] %s40
      %s42 = sshll.u32 [#allocation2], 4
      %s43 = int_to_ptr.vmem [resolvable:$true] %s42
      %48 = dma.hbm_to_vmem [thread:$0]  %s41, 1024, %s43, [#allocation3], 256, 256, 16
    $region25: #{tpu_custom_call.1} parent=1 // pred_fallthru
      _
    // Predicated region
    $region26: #{tpu_custom_call.1} parent=1 // pred_check
      _
    $region27: #{tpu_custom_call.1} parent=1 // pred_check_branch
      %50 = sbr.rel (0) target = $region29
    $region28: #{tpu_custom_call.1} parent=1 // pred_region
      _
    $region29: #{tpu_custom_call.1} parent=1 // pred_fallthru
      _
    // Predicated region
    $region30: #{tpu_custom_call.1} parent=1 // pred_check
      _
    $region31: #{tpu_custom_call.1} parent=1 // pred_check_branch
      %52 = sbr.rel (0) target = $region33
    $region32: #{tpu_custom_call.1} parent=1 // pred_region
      _
    $region33: #{tpu_custom_call.1} parent=1 // pred_fallthru
      _
    // Predicated region
    $region34: #{tpu_custom_call.1} parent=1 // pred_check
      _
    $region35: #{tpu_custom_call.1} parent=1 // pred_check_branch
      %54 = sbr.rel (0) target = $region37
    $region36: #{tpu_custom_call.1} parent=1 // pred_region
      %56 = vsyncadd [#allocation6], 0
      %s57 = sshll.u32 %s8, 4
      %s58 = int_to_ptr.hbm [resolvable:$true] %s57
      %s59 = sshll.u32 [#allocation5], 4
      %s60 = int_to_ptr.vmem [resolvable:$true] %s59
      %65 = dma.hbm_to_vmem [thread:$0]  %s58, 1024, %s60, [#allocation6], 128, 128, 8
    $region37: #{tpu_custom_call.1} parent=1 // pred_fallthru
      _
    // Predicated region
    $region38: #{tpu_custom_call.1} parent=1 // pred_check
      _
    $region39: #{tpu_custom_call.1} parent=1 // pred_check_branch
      %67 = sbr.rel (0) target = $region41
    $region40: #{tpu_custom_call.1} parent=1 // pred_region
      _
    $region41: #{tpu_custom_call.1} parent=1 // pred_fallthru
      _
    // Predicated region
    $region42: #{tpu_custom_call.1} parent=1 // pred_check
      _
    $region43: #{tpu_custom_call.1} parent=1 // pred_check_branch
      %69 = sbr.rel (0) target = $region45
    $region44: #{tpu_custom_call.1} parent=1 // pred_region
      _
    $region45: #{tpu_custom_call.1} parent=1 // pred_fallthru
      _
    // Predicated region
    $region46: #{tpu_custom_call.1} parent=1 // pred_check
      _
    $region47: #{tpu_custom_call.1} parent=1 // pred_check_branch
      %71 = sbr.rel (0) target = $region49
    $region48: #{tpu_custom_call.1} parent=1 // pred_region
      _
    $region49: #{tpu_custom_call.1} parent=1 // pred_fallthru
      _
    // Predicated region
    $region50: #{tpu_custom_call.1} parent=1 // pred_check
      _
    $region51: #{tpu_custom_call.1} parent=1 // pred_check_branch
      %73 = sbr.rel (0) target = $region53
    $region52: #{tpu_custom_call.1} parent=1 // pred_region
      _
    $region53: #{tpu_custom_call.1} parent=1 // pred_fallthru
      _
    // Predicated region
    $region54: #{tpu_custom_call.1} parent=1 // pred_check
      _
    $region55: #{tpu_custom_call.1} parent=1 // pred_check_branch
      %75 = sbr.rel (0) target = $region57
    $region56: #{tpu_custom_call.1} parent=1 // pred_region
      _
    $region57: #{tpu_custom_call.1} parent=1 // pred_fallthru
      _
    // Predicated region
    $region58: #{tpu_custom_call.1} parent=1 // pred_check
      _
    $region59: #{tpu_custom_call.1} parent=1 // pred_check_branch
      %77 = sbr.rel (0) target = $region61
    $region60: #{tpu_custom_call.1} parent=1 // pred_region
      _
    $region61: #{tpu_custom_call.1} parent=1 // pred_fallthru
      _
    // Predicated region
    $region62: #{tpu_custom_call.1} parent=1 // pred_check
      _
    $region63: #{tpu_custom_call.1} parent=1 // pred_check_branch
      %79 = sbr.rel (0) target = $region65
    $region64: #{tpu_custom_call.1} parent=1 // pred_region
      _
    $region65: #{tpu_custom_call.1} parent=1 // pred_fallthru
      _
    // Predicated region
    $region66: #{tpu_custom_call.1} parent=1 // pred_check
      _
    $region67: #{tpu_custom_call.1} parent=1 // pred_check_branch
      %81 = sbr.rel (0) target = $region69
    $region68: #{tpu_custom_call.1} parent=1 // pred_region
      _
    $region69: #{tpu_custom_call.1} parent=1 // pred_fallthru
      _
    // Predicated region
    $region70: #{tpu_custom_call.1} parent=1 // pred_check
      _
    $region71: #{tpu_custom_call.1} parent=1 // pred_check_branch
      %83 = sbr.rel (0) target = $region73
    $region72: #{tpu_custom_call.1} parent=1 // pred_region
      _
    $region73: #{tpu_custom_call.1} parent=1 // pred_fallthru
      _
    // Predicated region
    $region74: #{tpu_custom_call.1} parent=1 // pred_check
      _
    $region75: #{tpu_custom_call.1} parent=1 // pred_check_branch
      %85 = sbr.rel (0) target = $region77
    $region76: #{tpu_custom_call.1} parent=1 // pred_region
      %87 = dma.done [#allocation3], 1024
    $region77: #{tpu_custom_call.1} parent=1 // pred_fallthru
      _
    // Predicated region
    $region78: #{tpu_custom_call.1} parent=1 // pred_check
      _
    $region79: #{tpu_custom_call.1} parent=1 // pred_check_branch
      %89 = sbr.rel (0) target = $region81
    $region80: #{tpu_custom_call.1} parent=1 // pred_region
      %91 = dma.done [#allocation6], 1024
    $region81: #{tpu_custom_call.1} parent=1 // pred_fallthru
      _
    %v92 = vld [vmem:[%s0] sm:$0xff]
    %v93 = vld [vmem:[%s0 + $0x8] sm:$0xff]
    %v94 = vld [vmem:[%s1] sm:$0xff]
    %v95 = vld [vmem:[%s1 + $0x8] sm:$0xff]
    %v96 = vld [vmem:[%s2] sm:$0x1]
    %v98 = vperm.slane %v96, 0
    %vm100 = vcmask 130048
    %v102 = vsel %vm100, %v92, 0
    %v105 = vsel %vm100, %v93, 0
    %107 = vmatpush.msra.mxu0 0.0
    %108 = vmatpush.msra.mxu0 0.0
    %109 = vmatpush.msra.mxu0 0.0
    %110 = vmatpush.msra.mxu0 0.0
    %111 = vmatpush.msra.mxu0 0.0
    %112 = vmatpush.msra.mxu0 0.0
    %113 = vmatpush.msra.mxu0 0.0
    %114 = vmatpush.msra.mxu0 0.0
    %115 = vmatpush.msra.mxu0 0.0
    %116 = vmatpush.msra.mxu0 0.0
    %117 = vmatpush.msra.mxu0 0.0
    %118 = vmatpush.msra.mxu0 0.0
    %119 = vmatpush.msra.mxu0 0.0
    %120 = vmatpush.msra.mxu0 0.0
    %121 = vmatpush.msra.mxu0 %v95
    %122 = vmatpush.msra.mxu0 %v94
    %123 = vmatmul.f32.gmra.mxu0 %v102
    %v124 = vpop.f32.mrf.mxu0
    %v125 = vadd.f32 %v98, %v124
    %126 = vmatmul.f32.gmra.mxu0 %v105
    %v127 = vpop.f32.mrf.mxu0
    %v128 = vadd.f32 %v98, %v127
    %129 = vdwg.mxu0
    %v130 = vmax.f32 %v125, 0.0
    %v131 = vmax.f32 %v128, 0.0
    %v132 = vld [vmem:[%s3] sm:$0x1]
    %v133 = vld [vmem:[%s4] sm:$0x1]
    %vm134 = vcmask 261120
    %v135 = vsel %vm134, %v130, 0.0
    %v136 = vsel %vm134, %v131, 0.0
    %v137 = vadd.f32 %v135, %v136
    %v138 = vrot.slane %v137, 4
    %v139 = vadd.f32 %v137, %v138
    %v140 = vrot.slane %v139, 2
    %v141 = vadd.f32 %v139, %v140
    %v142 = vrot.slane %v141, 1
    %v143 = vadd.f32 %v141, %v142
    %v144 = vrcp.pop 16.0
    %v145 = vmul.f32 16.0, %v144
    %v146 = vsub.f32 1.0, %v145
    %v147 = vmul.f32 %v144, %v146
    %v148 = vadd.f32 %v144, %v147
    %vm149 = vweird.f32 %v144
    %v150 = vsel %vm149, %v144, %v148
    %v151 = vmul.f32 %v143, %v150
    %v152 = vsub.f32 %v130, %v151
    %v153 = vsub.f32 %v131, %v151
    %v154 = vmul.f32 %v152, %v152
    %v155 = vmul.f32 %v153, %v153
    %v156 = vsel %vm134, %v154, 0.0
    %v157 = vsel %vm134, %v155, 0.0
    %v158 = vadd.f32 %v156, %v157
    %v159 = vrot.slane %v158, 4
    %v160 = vadd.f32 %v158, %v159
    %v161 = vrot.slane %v160, 2
    %v162 = vadd.f32 %v160, %v161
    %v163 = vrot.slane %v162, 1
    %v164 = vadd.f32 %v162, %v163
    %v165 = vmul.f32 %v164, %v150
    %v167 = vperm.slane %v132, 0
    %v169 = vmul.f32 %v167, %v152
    %v170 = vmul.f32 %v167, %v153
    %v171 = vadd.f32 %v165, 1e-05
    %v172 = vrsqrt.pop %v171
    %v173 = vmul.f32 %v172, %v171
    %v174 = vmul.f32 %v173, %v172
    %v175 = vmul.f32 0.5, %v174
    %v176 = vsub.f32 1.5, %v175
    %v177 = vmul.f32 %v172, %v176
    %vm178 = vweird.f32 %v171
    %vm179 = vweird.f32 %v172
    %vm180 = vmor %vm178, %vm179
    %v181 = vsel %vm180, %v172, %v177
    %v182 = vmul.f32 %v169, %v181
    %v183 = vmul.f32 %v170, %v181
    %v185 = vperm.slane %v133, 0
    %v187 = vadd.f32 %v182, %v185
    %v188 = vadd.f32 %v183, %v185
    %v189 = vld [vmem:[#allocation2] sm:$0xff]
    %v190 = vld [vmem:[#allocation2 + $0x8] sm:$0xff]
    %v191 = vld [vmem:[#allocation2 + $0x10] sm:$0xff]
    %v192 = vld [vmem:[#allocation2 + $0x18] sm:$0xff]
    %v193 = vld [vmem:[#allocation2 + $0x20] sm:$0xff]
    %v194 = vld [vmem:[#allocation2 + $0x28] sm:$0xff]
    %v195 = vld [vmem:[#allocation2 + $0x30] sm:$0xff]
    %v196 = vld [vmem:[#allocation2 + $0x38] sm:$0xff]
    %v197 = vld [vmem:[%s6] sm:$0x3]
    %v199 = vperm.slane %v197, 0
    %v200 = vperm.slane %v197, 1
    %v204 = vsel %vm134, %v187, 0
    %v207 = vsel %vm134, %v188, 0
    %209 = vmatpush.msra.mxu0 0.0
    %210 = vmatpush.msra.mxu0 0.0
    %211 = vmatpush.msra.mxu0 0.0
    %212 = vmatpush.msra.mxu0 0.0
    %213 = vmatpush.msra.mxu0 0.0
    %214 = vmatpush.msra.mxu0 0.0
    %215 = vmatpush.msra.mxu0 0.0
    %216 = vmatpush.msra.mxu0 0.0
    %217 = vmatpush.msra.mxu0 0.0
    %218 = vmatpush.msra.mxu0 0.0
    %219 = vmatpush.msra.mxu0 0.0
    %220 = vmatpush.msra.mxu0 0.0
    %221 = vmatpush.msra.mxu0 %v195
    %222 = vmatpush.msra.mxu0 %v193
    %223 = vmatpush.msra.mxu0 %v191
    %224 = vmatpush.msra.mxu0 %v189
    %225 = vmatmul.f32.gmra.mxu0 %v204
    %v226 = vpop.f32.mrf.mxu0
    %v227 = vadd.f32 %v199, %v226
    %228 = vmatmul.f32.gmra.mxu0 %v207
    %v229 = vpop.f32.mrf.mxu0
    %v230 = vadd.f32 %v199, %v229
    %231 = vdwg.mxu0
    %232 = vmatpush.msra.mxu0 0.0
    %233 = vmatpush.msra.mxu0 0.0
    %234 = vmatpush.msra.mxu0 0.0
    %235 = vmatpush.msra.mxu0 0.0
    %236 = vmatpush.msra.mxu0 0.0
    %237 = vmatpush.msra.mxu0 0.0
    %238 = vmatpush.msra.mxu0 0.0
    %239 = vmatpush.msra.mxu0 0.0
    %240 = vmatpush.msra.mxu0 0.0
    %241 = vmatpush.msra.mxu0 0.0
    %242 = vmatpush.msra.mxu0 0.0
    %243 = vmatpush.msra.mxu0 0.0
    %244 = vmatpush.msra.mxu0 %v196
    %245 = vmatpush.msra.mxu0 %v194
    %246 = vmatpush.msra.mxu0 %v192
    %247 = vmatpush.msra.mxu0 %v190
    %248 = vmatmul.f32.gmra.mxu0 %v204
    %v249 = vpop.f32.mrf.mxu0
    %v250 = vadd.f32 %v200, %v249
    %251 = vmatmul.f32.gmra.mxu0 %v207
    %v252 = vpop.f32.mrf.mxu0
    %v253 = vadd.f32 %v200, %v252
    %254 = vdwg.mxu0
    %v255 = vld [vmem:[%s7] sm:$0xff]
    %v256 = vld [vmem:[%s7 + $0x8] sm:$0xff]
    %v257 = vld [vmem:[%s7 + $0x10] sm:$0xff]
    %v258 = vld [vmem:[%s7 + $0x18] sm:$0xff]
    %v259 = vld [vmem:[%s7 + $0x20] sm:$0xff]
    %v260 = vld [vmem:[%s7 + $0x28] sm:$0xff]
    %v261 = vld [vmem:[%s7 + $0x30] sm:$0xff]
    %v262 = vld [vmem:[%s7 + $0x38] sm:$0xff]
    %v263 = vld [vmem:[%s7 + $0x40] sm:$0xff]
    %v264 = vld [vmem:[%s7 + $0x48] sm:$0xff]
    %v265 = vld [vmem:[%s7 + $0x50] sm:$0xff]
    %v266 = vld [vmem:[%s7 + $0x58] sm:$0xff]
    %v267 = vld [vmem:[%s7 + $0x60] sm:$0xff]
    %v268 = vld [vmem:[%s7 + $0x68] sm:$0xff]
    %v269 = vld [vmem:[%s7 + $0x70] sm:$0xff]
    %v270 = vld [vmem:[%s7 + $0x78] sm:$0xff]
    %v273 = vrot.slane %v230, 7
    %vm274 = vcmask 1041409
    %v275 = vsel %vm274, %v273, %v227
    %v279 = vrot.slane %v250, 7
    %v280 = vrot.slane %v253, 6
    %v281 = vsel %vm274, %v280, %v279
    %vm283 = vcmask 523264
    %v285 = vsel %vm283, 0.0, 0
    %287 = vmatpush.msra.mxu0 0.0
    %288 = vmatpush.msra.mxu0 0.0
    %289 = vmatpush.msra.mxu0 0.0
    %290 = vmatpush.msra.mxu0 0.0
    %291 = vmatpush.msra.mxu0 0.0
    %292 = vmatpush.msra.mxu0 0.0
    %293 = vmatpush.msra.mxu0 0.0
    %294 = vmatpush.msra.mxu0 0.0
    %295 = vmatpush.msra.mxu0 %v269
    %296 = vmatpush.msra.mxu0 %v267
    %297 = vmatpush.msra.mxu0 %v265
    %298 = vmatpush.msra.mxu0 %v263
    %299 = vmatpush.msra.mxu0 %v261
    %300 = vmatpush.msra.mxu0 %v259
    %301 = vmatpush.msra.mxu0 %v257
    %302 = vmatpush.msra.mxu0 %v255
    %303 = vmatmul.f32.gmra.mxu0 %v285
    %v304 = vpop.f32.mrf.mxu0
    %v305 = vadd.f32 0.0, %v304
    %306 = vdwg.mxu0
    %307 = vmatpush.msra.mxu0 0.0
    %308 = vmatpush.msra.mxu0 0.0
    %309 = vmatpush.msra.mxu0 0.0
    %310 = vmatpush.msra.mxu0 0.0
    %311 = vmatpush.msra.mxu0 0.0
    %312 = vmatpush.msra.mxu0 0.0
    %313 = vmatpush.msra.mxu0 0.0
    %314 = vmatpush.msra.mxu0 0.0
    %315 = vmatpush.msra.mxu0 %v270
    %316 = vmatpush.msra.mxu0 %v268
    %317 = vmatpush.msra.mxu0 %v266
    %318 = vmatpush.msra.mxu0 %v264
    %319 = vmatpush.msra.mxu0 %v262
    %320 = vmatpush.msra.mxu0 %v260
    %321 = vmatpush.msra.mxu0 %v258
    %322 = vmatpush.msra.mxu0 %v256
    %323 = vmatmul.f32.gmra.mxu0 %v285
    %v324 = vpop.f32.mrf.mxu0
    %v325 = vadd.f32 0.0, %v324
    %326 = vdwg.mxu0
    %v327 = vadd.f32 %v275, %v305
    %v328 = vadd.f32 %v281, %v325
    %v329 = vxor.u32 %v327, 2147483648
    %v330 = vmul.f32 %v329, 1.442695
    %v331 = vpow.pop %v330
    %v332 = vadd.f32 %v331, 1.0
    %v333 = vrcp.pop %v332
    %v334 = vmul.f32 %v332, %v333
    %v335 = vsub.f32 1.0, %v334
    %v336 = vmul.f32 %v333, %v335
    %v337 = vadd.f32 %v333, %v336
    %vm338 = vweird.f32 %v332
    %vm339 = vweird.f32 %v333
    %vm340 = vmor %vm338, %vm339
    %v341 = vsel %vm340, %v333, %v337
    %v342 = vand.u32 2147483647, %v332
    %vm343 = vcmp.eq.f32.partialorder %v342, 8.507059e+37
    %v344 = vand.u32 %v332, 2147483648
    %v345 = vor.u32 1.1754944e-38, %v344
    %v346 = vsel %vm343, %v345, %v341
    %v347 = vmul.f32 1.0, %v346
    %v348 = vtanh.pop %v327
    %v349 = vxor.u32 %v328, 2147483648
    %v350 = vmul.f32 %v349, 1.442695
    %v351 = vpow.pop %v350
    %v352 = vadd.f32 %v351, 1.0
    %v353 = vrcp.pop %v352
    %v354 = vmul.f32 %v352, %v353
    %v355 = vsub.f32 1.0, %v354
    %v356 = vmul.f32 %v353, %v355
    %v357 = vadd.f32 %v353, %v356
    %vm358 = vweird.f32 %v352
    %vm359 = vweird.f32 %v353
    %vm360 = vmor %vm358, %vm359
    %v361 = vsel %vm360, %v353, %v357
    %v362 = vand.u32 2147483647, %v352
    %vm363 = vcmp.eq.f32.partialorder %v362, 8.507059e+37
    %v364 = vand.u32 %v352, 2147483648
    %v365 = vor.u32 1.1754944e-38, %v364
    %v366 = vsel %vm363, %v365, %v361
    %v367 = vmul.f32 1.0, %v366
    %v368 = vtanh.pop %v328
    %v369 = vmul.f32 %v347, 0.0
    %371 = vrot.lane.b32.xlu0 %v348, 64
    %v372 = vpop.permute.xlu0 %371
    %v374 = vmul.f32 %v347, %v372
    %376 = vrot.lane.b32.xlu0 %v374, 32
    %v377 = vpop.permute.xlu0 %376
    %v379 = vadd.f32 %v369, %v377
    %v380 = vmul.f32 %v367, 0.0
    %382 = vrot.lane.b32.xlu0 %v368, 64
    %v383 = vpop.permute.xlu0 %382
    %v385 = vmul.f32 %v367, %v383
    %387 = vrot.lane.b32.xlu0 %v385, 32
    %v388 = vpop.permute.xlu0 %387
    %v390 = vadd.f32 %v380, %v388
    %v391 = vtanh.pop %v379
    %393 = vrot.lane.b32.xlu0 %v391, 64
    %v394 = vpop.permute.xlu0 %393
    %v396 = vmul.f32 %v347, %v394
    %v397 = vtanh.pop %v390
    %399 = vrot.lane.b32.xlu0 %v397, 64
    %v400 = vpop.permute.xlu0 %399
    %v402 = vmul.f32 %v367, %v400
    %404 = vrot.lane.b32.xlu0 %v396, 32
    %v405 = vpop.permute.xlu0 %404
    %408 = vrot.lane.b32.xlu0 %v402, 64
    %v409 = vpop.permute.xlu0 %408
    %v411 = vsel %vm134, %v405, %v409
    %vm412 = vcmask 1042434
    %v413 = vsel %vm412, %v273, %v227
    %v415 = vrot.slane %v250, 5
    %v416 = vrot.slane %v253, 4
    %v417 = vsel %vm412, %v416, %v415
    %v420 = vsel %vm283, %v411, 0
    %422 = vmatpush.msra.mxu0 0.0
    %423 = vmatpush.msra.mxu0 0.0
    %424 = vmatpush.msra.mxu0 0.0
    %425 = vmatpush.msra.mxu0 0.0
    %426 = vmatpush.msra.mxu0 0.0
    %427 = vmatpush.msra.mxu0 0.0
    %428 = vmatpush.msra.mxu0 0.0
    %429 = vmatpush.msra.mxu0 0.0
    %430 = vmatpush.msra.mxu0 %v269
    %431 = vmatpush.msra.mxu0 %v267
    %432 = vmatpush.msra.mxu0 %v265
    %433 = vmatpush.msra.mxu0 %v263
    %434 = vmatpush.msra.mxu0 %v261
    %435 = vmatpush.msra.mxu0 %v259
    %436 = vmatpush.msra.mxu0 %v257
    %437 = vmatpush.msra.mxu0 %v255
    %438 = vmatmul.f32.gmra.mxu0 %v420
    %v439 = vpop.f32.mrf.mxu0
    %v440 = vadd.f32 0.0, %v439
    %441 = vdwg.mxu0
    %442 = vmatpush.msra.mxu0 0.0
    %443 = vmatpush.msra.mxu0 0.0
    %444 = vmatpush.msra.mxu0 0.0
    %445 = vmatpush.msra.mxu0 0.0
    %446 = vmatpush.msra.mxu0 0.0
    %447 = vmatpush.msra.mxu0 0.0
    %448 = vmatpush.msra.mxu0 0.0
    %449 = vmatpush.msra.mxu0 0.0
    %450 = vmatpush.msra.mxu0 %v270
    %451 = vmatpush.msra.mxu0 %v268
    %452 = vmatpush.msra.mxu0 %v266
    %453 = vmatpush.msra.mxu0 %v264
    %454 = vmatpush.msra.mxu0 %v262
    %455 = vmatpush.msra.mxu0 %v260
    %456 = vmatpush.msra.mxu0 %v258
    %457 = vmatpush.msra.mxu0 %v256
    %458 = vmatmul.f32.gmra.mxu0 %v420
    %v459 = vpop.f32.mrf.mxu0
    %v460 = vadd.f32 0.0, %v459
    %461 = vdwg.mxu0
    %v464 = vrot.slane %v440, 7
    %v465 = vrot.slane %v460, 7
    %v468 = vadd.f32 %v413, %v464
    %v469 = vadd.f32 %v417, %v465
    %v470 = vxor.u32 %v468, 2147483648
    %v471 = vmul.f32 %v470, 1.442695
    %v472 = vpow.pop %v471
    %v473 = vadd.f32 %v472, 1.0
    %v474 = vrcp.pop %v473
    %v475 = vmul.f32 %v473, %v474
    %v476 = vsub.f32 1.0, %v475
    %v477 = vmul.f32 %v474, %v476
    %v478 = vadd.f32 %v474, %v477
    %vm479 = vweird.f32 %v473
    %vm480 = vweird.f32 %v474
    %vm481 = vmor %vm479, %vm480
    %v482 = vsel %vm481, %v474, %v478
    %v483 = vand.u32 2147483647, %v473
    %vm484 = vcmp.eq.f32.partialorder %v483, 8.507059e+37
    %v485 = vand.u32 %v473, 2147483648
    %v486 = vor.u32 1.1754944e-38, %v485
    %v487 = vsel %vm484, %v486, %v482
    %v488 = vmul.f32 1.0, %v487
    %v489 = vtanh.pop %v468
    %v490 = vxor.u32 %v469, 2147483648
    %v491 = vmul.f32 %v490, 1.442695
    %v492 = vpow.pop %v491
    %v493 = vadd.f32 %v492, 1.0
    %v494 = vrcp.pop %v493
    %v495 = vmul.f32 %v493, %v494
    %v496 = vsub.f32 1.0, %v495
    %v497 = vmul.f32 %v494, %v496
    %v498 = vadd.f32 %v494, %v497
    %vm499 = vweird.f32 %v493
    %vm500 = vweird.f32 %v494
    %vm501 = vmor %vm499, %vm500
    %v502 = vsel %vm501, %v494, %v498
    %v503 = vand.u32 2147483647, %v493
    %vm504 = vcmp.eq.f32.partialorder %v503, 8.507059e+37
    %v505 = vand.u32 %v493, 2147483648
    %v506 = vor.u32 1.1754944e-38, %v505
    %v507 = vsel %vm504, %v506, %v502
    %v508 = vmul.f32 1.0, %v507
    %v509 = vtanh.pop %v469
    %v511 = vrot.slane %v379, 7
    %v513 = vmul.f32 %v488, %v511
    %515 = vrot.lane.b32.xlu0 %v489, 64
    %v516 = vpop.permute.xlu0 %515
    %v518 = vmul.f32 %v488, %v516
    %520 = vrot.lane.b32.xlu0 %v518, 32
    %v521 = vpop.permute.xlu0 %520
    %v523 = vadd.f32 %v513, %v521
    %v525 = vrot.slane %v390, 7
    %v527 = vmul.f32 %v508, %v525
    %529 = vrot.lane.b32.xlu0 %v509, 64
    %v530 = vpop.permute.xlu0 %529
    %v532 = vmul.f32 %v508, %v530
    %534 = vrot.lane.b32.xlu0 %v532, 32
    %v535 = vpop.permute.xlu0 %534
    %v537 = vadd.f32 %v527, %v535
    %v538 = vtanh.pop %v523
    %540 = vrot.lane.b32.xlu0 %v538, 64
    %v541 = vpop.permute.xlu0 %540
    %v543 = vmul.f32 %v488, %v541
    %v544 = vtanh.pop %v537
    %546 = vrot.lane.b32.xlu0 %v544, 64
    %v547 = vpop.permute.xlu0 %546
    %v549 = vmul.f32 %v508, %v547
    %551 = vrot.lane.b32.xlu0 %v543, 32
    %v552 = vpop.permute.xlu0 %551
    %555 = vrot.lane.b32.xlu0 %v549, 64
    %v556 = vpop.permute.xlu0 %555
    %v558 = vsel %vm134, %v552, %v556
    %vm559 = vcmask 1043459
    %v560 = vsel %vm559, %v273, %v227
    %v562 = vrot.slane %v250, 3
    %v563 = vrot.slane %v253, 2
    %v564 = vsel %vm559, %v563, %v562
    %v567 = vrot.slane %v558, 1
    %v568 = vsel %vm283, %v567, 0
    %570 = vmatpush.msra.mxu0 0.0
    %571 = vmatpush.msra.mxu0 0.0
    %572 = vmatpush.msra.mxu0 0.0
    %573 = vmatpush.msra.mxu0 0.0
    %574 = vmatpush.msra.mxu0 0.0
    %575 = vmatpush.msra.mxu0 0.0
    %576 = vmatpush.msra.mxu0 0.0
    %577 = vmatpush.msra.mxu0 0.0
    %578 = vmatpush.msra.mxu0 %v269
    %579 = vmatpush.msra.mxu0 %v267
    %580 = vmatpush.msra.mxu0 %v265
    %581 = vmatpush.msra.mxu0 %v263
    %582 = vmatpush.msra.mxu0 %v261
    %583 = vmatpush.msra.mxu0 %v259
    %584 = vmatpush.msra.mxu0 %v257
    %585 = vmatpush.msra.mxu0 %v255
    %586 = vmatmul.f32.gmra.mxu0 %v568
    %v587 = vpop.f32.mrf.mxu0
    %v588 = vadd.f32 0.0, %v587
    %589 = vdwg.mxu0
    %590 = vmatpush.msra.mxu0 0.0
    %591 = vmatpush.msra.mxu0 0.0
    %592 = vmatpush.msra.mxu0 0.0
    %593 = vmatpush.msra.mxu0 0.0
    %594 = vmatpush.msra.mxu0 0.0
    %595 = vmatpush.msra.mxu0 0.0
    %596 = vmatpush.msra.mxu0 0.0
    %597 = vmatpush.msra.mxu0 0.0
    %598 = vmatpush.msra.mxu0 %v270
    %599 = vmatpush.msra.mxu0 %v268
    %600 = vmatpush.msra.mxu0 %v266
    %601 = vmatpush.msra.mxu0 %v264
    %602 = vmatpush.msra.mxu0 %v262
    %603 = vmatpush.msra.mxu0 %v260
    %604 = vmatpush.msra.mxu0 %v258
    %605 = vmatpush.msra.mxu0 %v256
    %606 = vmatmul.f32.gmra.mxu0 %v568
    %v607 = vpop.f32.mrf.mxu0
    %v608 = vadd.f32 0.0, %v607
    %609 = vdwg.mxu0
    %v612 = vrot.slane %v588, 6
    %v613 = vrot.slane %v608, 6
    %v616 = vadd.f32 %v560, %v612
    %v617 = vadd.f32 %v564, %v613
    %v618 = vxor.u32 %v616, 2147483648
    %v619 = vmul.f32 %v618, 1.442695
    %v620 = vpow.pop %v619
    %v621 = vadd.f32 %v620, 1.0
    %v622 = vrcp.pop %v621
    %v623 = vmul.f32 %v621, %v622
    %v624 = vsub.f32 1.0, %v623
    %v625 = vmul.f32 %v622, %v624
    %v626 = vadd.f32 %v622, %v625
    %vm627 = vweird.f32 %v621
    %vm628 = vweird.f32 %v622
    %vm629 = vmor %vm627, %vm628
    %v630 = vsel %vm629, %v622, %v626
    %v631 = vand.u32 2147483647, %v621
    %vm632 = vcmp.eq.f32.partialorder %v631, 8.507059e+37
    %v633 = vand.u32 %v621, 2147483648
    %v634 = vor.u32 1.1754944e-38, %v633
    %v635 = vsel %vm632, %v634, %v630
    %v636 = vmul.f32 1.0, %v635
    %v637 = vtanh.pop %v616
    %v638 = vxor.u32 %v617, 2147483648
    %v639 = vmul.f32 %v638, 1.442695
    %v640 = vpow.pop %v639
    %v641 = vadd.f32 %v640, 1.0
    %v642 = vrcp.pop %v641
    %v643 = vmul.f32 %v641, %v642
    %v644 = vsub.f32 1.0, %v643
    %v645 = vmul.f32 %v642, %v644
    %v646 = vadd.f32 %v642, %v645
    %vm647 = vweird.f32 %v641
    %vm648 = vweird.f32 %v642
    %vm649 = vmor %vm647, %vm648
    %v650 = vsel %vm649, %v642, %v646
    %v651 = vand.u32 2147483647, %v641
    %vm652 = vcmp.eq.f32.partialorder %v651, 8.507059e+37
    %v653 = vand.u32 %v641, 2147483648
    %v654 = vor.u32 1.1754944e-38, %v653
    %v655 = vsel %vm652, %v654, %v650
    %v656 = vmul.f32 1.0, %v655
    %v657 = vtanh.pop %v617
    %v659 = vrot.slane %v523, 7
    %v661 = vmul.f32 %v636, %v659
    %663 = vrot.lane.b32.xlu0 %v637, 64
    %v664 = vpop.permute.xlu0 %663
    %v666 = vmul.f32 %v636, %v664
    %668 = vrot.lane.b32.xlu0 %v666, 32
    %v669 = vpop.permute.xlu0 %668
    %v671 = vadd.f32 %v661, %v669
    %v673 = vrot.slane %v537, 7
    %v675 = vmul.f32 %v656, %v673
    %677 = vrot.lane.b32.xlu0 %v657, 64
    %v678 = vpop.permute.xlu0 %677
    %v680 = vmul.f32 %v656, %v678
    %682 = vrot.lane.b32.xlu0 %v680, 32
    %v683 = vpop.permute.xlu0 %682
    %v685 = vadd.f32 %v675, %v683
    %v686 = vtanh.pop %v671
    %688 = vrot.lane.b32.xlu0 %v686, 64
    %v689 = vpop.permute.xlu0 %688
    %v691 = vmul.f32 %v636, %v689
    %v692 = vtanh.pop %v685
    %694 = vrot.lane.b32.xlu0 %v692, 64
    %v695 = vpop.permute.xlu0 %694
    %v697 = vmul.f32 %v656, %v695
    %699 = vrot.lane.b32.xlu0 %v691, 32
    %v700 = vpop.permute.xlu0 %699
    %703 = vrot.lane.b32.xlu0 %v697, 64
    %v704 = vpop.permute.xlu0 %703
    %v706 = vsel %vm134, %v700, %v704
    %vm707 = vcmask 1044484
    %v708 = vsel %vm707, %v273, %v227
    %v710 = vrot.slane %v250, 1
    %v711 = vsel %vm707, %v253, %v710
    %v714 = vrot.slane %v706, 2
    %v715 = vsel %vm283, %v714, 0
    %717 = vmatpush.msra.mxu0 0.0
    %718 = vmatpush.msra.mxu0 0.0
    %719 = vmatpush.msra.mxu0 0.0
    %720 = vmatpush.msra.mxu0 0.0
    %721 = vmatpush.msra.mxu0 0.0
    %722 = vmatpush.msra.mxu0 0.0
    %723 = vmatpush.msra.mxu0 0.0
    %724 = vmatpush.msra.mxu0 0.0
    %725 = vmatpush.msra.mxu0 %v269
    %726 = vmatpush.msra.mxu0 %v267
    %727 = vmatpush.msra.mxu0 %v265
    %728 = vmatpush.msra.mxu0 %v263
    %729 = vmatpush.msra.mxu0 %v261
    %730 = vmatpush.msra.mxu0 %v259
    %731 = vmatpush.msra.mxu0 %v257
    %732 = vmatpush.msra.mxu0 %v255
    %733 = vmatmul.f32.gmra.mxu0 %v715
    %v734 = vpop.f32.mrf.mxu0
    %v735 = vadd.f32 0.0, %v734
    %736 = vdwg.mxu0
    %737 = vmatpush.msra.mxu0 0.0
    %738 = vmatpush.msra.mxu0 0.0
    %739 = vmatpush.msra.mxu0 0.0
    %740 = vmatpush.msra.mxu0 0.0
    %741 = vmatpush.msra.mxu0 0.0
    %742 = vmatpush.msra.mxu0 0.0
    %743 = vmatpush.msra.mxu0 0.0
    %744 = vmatpush.msra.mxu0 0.0
    %745 = vmatpush.msra.mxu0 %v270
    %746 = vmatpush.msra.mxu0 %v268
    %747 = vmatpush.msra.mxu0 %v266
    %748 = vmatpush.msra.mxu0 %v264
    %749 = vmatpush.msra.mxu0 %v262
    %750 = vmatpush.msra.mxu0 %v260
    %751 = vmatpush.msra.mxu0 %v258
    %752 = vmatpush.msra.mxu0 %v256
    %753 = vmatmul.f32.gmra.mxu0 %v715
    %v754 = vpop.f32.mrf.mxu0
    %v755 = vadd.f32 0.0, %v754
    %756 = vdwg.mxu0
    %v759 = vrot.slane %v735, 5
    %v760 = vrot.slane %v755, 5
    %v763 = vadd.f32 %v708, %v759
    %v764 = vadd.f32 %v711, %v760
    %v765 = vxor.u32 %v763, 2147483648
    %v766 = vmul.f32 %v765, 1.442695
    %v767 = vpow.pop %v766
    %v768 = vadd.f32 %v767, 1.0
    %v769 = vrcp.pop %v768
    %v770 = vmul.f32 %v768, %v769
    %v771 = vsub.f32 1.0, %v770
    %v772 = vmul.f32 %v769, %v771
    %v773 = vadd.f32 %v769, %v772
    %vm774 = vweird.f32 %v768
    %vm775 = vweird.f32 %v769
    %vm776 = vmor %vm774, %vm775
    %v777 = vsel %vm776, %v769, %v773
    %v778 = vand.u32 2147483647, %v768
    %vm779 = vcmp.eq.f32.partialorder %v778, 8.507059e+37
    %v780 = vand.u32 %v768, 2147483648
    %v781 = vor.u32 1.1754944e-38, %v780
    %v782 = vsel %vm779, %v781, %v777
    %v783 = vmul.f32 1.0, %v782
    %v784 = vtanh.pop %v763
    %v785 = vxor.u32 %v764, 2147483648
    %v786 = vmul.f32 %v785, 1.442695
    %v787 = vpow.pop %v786
    %v788 = vadd.f32 %v787, 1.0
    %v789 = vrcp.pop %v788
    %v790 = vmul.f32 %v788, %v789
    %v791 = vsub.f32 1.0, %v790
    %v792 = vmul.f32 %v789, %v791
    %v793 = vadd.f32 %v789, %v792
    %vm794 = vweird.f32 %v788
    %vm795 = vweird.f32 %v789
    %vm796 = vmor %vm794, %vm795
    %v797 = vsel %vm796, %v789, %v793
    %v798 = vand.u32 2147483647, %v788
    %vm799 = vcmp.eq.f32.partialorder %v798, 8.507059e+37
    %v800 = vand.u32 %v788, 2147483648
    %v801 = vor.u32 1.1754944e-38, %v800
    %v802 = vsel %vm799, %v801, %v797
    %v803 = vmul.f32 1.0, %v802
    %v804 = vtanh.pop %v764
    %v806 = vrot.slane %v671, 7
    %v808 = vmul.f32 %v783, %v806
    %810 = vrot.lane.b32.xlu0 %v784, 64
    %v811 = vpop.permute.xlu0 %810
    %v813 = vmul.f32 %v783, %v811
    %815 = vrot.lane.b32.xlu0 %v813, 32
    %v816 = vpop.permute.xlu0 %815
    %v818 = vadd.f32 %v808, %v816
    %v820 = vrot.slane %v685, 7
    %v822 = vmul.f32 %v803, %v820
    %824 = vrot.lane.b32.xlu0 %v804, 64
    %v825 = vpop.permute.xlu0 %824
    %v827 = vmul.f32 %v803, %v825
    %829 = vrot.lane.b32.xlu0 %v827, 32
    %v830 = vpop.permute.xlu0 %829
    %v832 = vadd.f32 %v822, %v830
    %v833 = vtanh.pop %v818
    %835 = vrot.lane.b32.xlu0 %v833, 64
    %v836 = vpop.permute.xlu0 %835
    %v838 = vmul.f32 %v783, %v836
    %v839 = vtanh.pop %v832
    %841 = vrot.lane.b32.xlu0 %v839, 64
    %v842 = vpop.permute.xlu0 %841
    %v844 = vmul.f32 %v803, %v842
    %846 = vrot.lane.b32.xlu0 %v838, 32
    %v847 = vpop.permute.xlu0 %846
    %850 = vrot.lane.b32.xlu0 %v844, 64
    %v851 = vpop.permute.xlu0 %850
    %v853 = vsel %vm134, %v847, %v851
    %vm854 = vcmask 1045509
    %v855 = vsel %vm854, %v273, %v227
    %v857 = vsel %vm854, %v280, %v279
    %v860 = vrot.slane %v853, 3
    %v861 = vsel %vm283, %v860, 0
    %863 = vmatpush.msra.mxu0 0.0
    %864 = vmatpush.msra.mxu0 0.0
    %865 = vmatpush.msra.mxu0 0.0
    %866 = vmatpush.msra.mxu0 0.0
    %867 = vmatpush.msra.mxu0 0.0
    %868 = vmatpush.msra.mxu0 0.0
    %869 = vmatpush.msra.mxu0 0.0
    %870 = vmatpush.msra.mxu0 0.0
    %871 = vmatpush.msra.mxu0 %v269
    %872 = vmatpush.msra.mxu0 %v267
    %873 = vmatpush.msra.mxu0 %v265
    %874 = vmatpush.msra.mxu0 %v263
    %875 = vmatpush.msra.mxu0 %v261
    %876 = vmatpush.msra.mxu0 %v259
    %877 = vmatpush.msra.mxu0 %v257
    %878 = vmatpush.msra.mxu0 %v255
    %879 = vmatmul.f32.gmra.mxu0 %v861
    %v880 = vpop.f32.mrf.mxu0
    %v881 = vadd.f32 0.0, %v880
    %882 = vdwg.mxu0
    %883 = vmatpush.msra.mxu0 0.0
    %884 = vmatpush.msra.mxu0 0.0
    %885 = vmatpush.msra.mxu0 0.0
    %886 = vmatpush.msra.mxu0 0.0
    %887 = vmatpush.msra.mxu0 0.0
    %888 = vmatpush.msra.mxu0 0.0
    %889 = vmatpush.msra.mxu0 0.0
    %890 = vmatpush.msra.mxu0 0.0
    %891 = vmatpush.msra.mxu0 %v270
    %892 = vmatpush.msra.mxu0 %v268
    %893 = vmatpush.msra.mxu0 %v266
    %894 = vmatpush.msra.mxu0 %v264
    %895 = vmatpush.msra.mxu0 %v262
    %896 = vmatpush.msra.mxu0 %v260
    %897 = vmatpush.msra.mxu0 %v258
    %898 = vmatpush.msra.mxu0 %v256
    %899 = vmatmul.f32.gmra.mxu0 %v861
    %v900 = vpop.f32.mrf.mxu0
    %v901 = vadd.f32 0.0, %v900
    %902 = vdwg.mxu0
    %v905 = vrot.slane %v881, 4
    %v906 = vrot.slane %v901, 4
    %v909 = vadd.f32 %v855, %v905
    %v910 = vadd.f32 %v857, %v906
    %v911 = vxor.u32 %v909, 2147483648
    %v912 = vmul.f32 %v911, 1.442695
    %v913 = vpow.pop %v912
    %v914 = vadd.f32 %v913, 1.0
    %v915 = vrcp.pop %v914
    %v916 = vmul.f32 %v914, %v915
    %v917 = vsub.f32 1.0, %v916
    %v918 = vmul.f32 %v915, %v917
    %v919 = vadd.f32 %v915, %v918
    %vm920 = vweird.f32 %v914
    %vm921 = vweird.f32 %v915
    %vm922 = vmor %vm920, %vm921
    %v923 = vsel %vm922, %v915, %v919
    %v924 = vand.u32 2147483647, %v914
    %vm925 = vcmp.eq.f32.partialorder %v924, 8.507059e+37
    %v926 = vand.u32 %v914, 2147483648
    %v927 = vor.u32 1.1754944e-38, %v926
    %v928 = vsel %vm925, %v927, %v923
    %v929 = vmul.f32 1.0, %v928
    %v930 = vtanh.pop %v909
    %v931 = vxor.u32 %v910, 2147483648
    %v932 = vmul.f32 %v931, 1.442695
    %v933 = vpow.pop %v932
    %v934 = vadd.f32 %v933, 1.0
    %v935 = vrcp.pop %v934
    %v936 = vmul.f32 %v934, %v935
    %v937 = vsub.f32 1.0, %v936
    %v938 = vmul.f32 %v935, %v937
    %v939 = vadd.f32 %v935, %v938
    %vm940 = vweird.f32 %v934
    %vm941 = vweird.f32 %v935
    %vm942 = vmor %vm940, %vm941
    %v943 = vsel %vm942, %v935, %v939
    %v944 = vand.u32 2147483647, %v934
    %vm945 = vcmp.eq.f32.partialorder %v944, 8.507059e+37
    %v946 = vand.u32 %v934, 2147483648
    %v947 = vor.u32 1.1754944e-38, %v946
    %v948 = vsel %vm945, %v947, %v943
    %v949 = vmul.f32 1.0, %v948
    %v950 = vtanh.pop %v910
    %v952 = vrot.slane %v818, 7
    %v954 = vmul.f32 %v929, %v952
    %956 = vrot.lane.b32.xlu0 %v930, 64
    %v957 = vpop.permute.xlu0 %956
    %v959 = vmul.f32 %v929, %v957
    %961 = vrot.lane.b32.xlu0 %v959, 32
    %v962 = vpop.permute.xlu0 %961
    %v964 = vadd.f32 %v954, %v962
    %v966 = vrot.slane %v832, 7
    %v968 = vmul.f32 %v949, %v966
    %970 = vrot.lane.b32.xlu0 %v950, 64
    %v971 = vpop.permute.xlu0 %970
    %v973 = vmul.f32 %v949, %v971
    %975 = vrot.lane.b32.xlu0 %v973, 32
    %v976 = vpop.permute.xlu0 %975
    %v978 = vadd.f32 %v968, %v976
    %v979 = vtanh.pop %v964
    %981 = vrot.lane.b32.xlu0 %v979, 64
    %v982 = vpop.permute.xlu0 %981
    %v984 = vmul.f32 %v929, %v982
    %v985 = vtanh.pop %v978
    %987 = vrot.lane.b32.xlu0 %v985, 64
    %v988 = vpop.permute.xlu0 %987
    %v990 = vmul.f32 %v949, %v988
    %992 = vrot.lane.b32.xlu0 %v984, 32
    %v993 = vpop.permute.xlu0 %992
    %996 = vrot.lane.b32.xlu0 %v990, 64
    %v997 = vpop.permute.xlu0 %996
    %v999 = vsel %vm134, %v993, %v997
    %vm1000 = vcmask 1046534
    %v1001 = vsel %vm1000, %v273, %v227
    %v1003 = vsel %vm1000, %v416, %v415
    %v1006 = vrot.slane %v999, 4
    %v1007 = vsel %vm283, %v1006, 0
    %1009 = vmatpush.msra.mxu0 0.0
    %1010 = vmatpush.msra.mxu0 0.0
    %1011 = vmatpush.msra.mxu0 0.0
    %1012 = vmatpush.msra.mxu0 0.0
    %1013 = vmatpush.msra.mxu0 0.0
    %1014 = vmatpush.msra.mxu0 0.0
    %1015 = vmatpush.msra.mxu0 0.0
    %1016 = vmatpush.msra.mxu0 0.0
    %1017 = vmatpush.msra.mxu0 %v269
    %1018 = vmatpush.msra.mxu0 %v267
    %1019 = vmatpush.msra.mxu0 %v265
    %1020 = vmatpush.msra.mxu0 %v263
    %1021 = vmatpush.msra.mxu0 %v261
    %1022 = vmatpush.msra.mxu0 %v259
    %1023 = vmatpush.msra.mxu0 %v257
    %1024 = vmatpush.msra.mxu0 %v255
    %1025 = vmatmul.f32.gmra.mxu0 %v1007
    %v1026 = vpop.f32.mrf.mxu0
    %v1027 = vadd.f32 0.0, %v1026
    %1028 = vdwg.mxu0
    %1029 = vmatpush.msra.mxu0 0.0
    %1030 = vmatpush.msra.mxu0 0.0
    %1031 = vmatpush.msra.mxu0 0.0
    %1032 = vmatpush.msra.mxu0 0.0
    %1033 = vmatpush.msra.mxu0 0.0
    %1034 = vmatpush.msra.mxu0 0.0
    %1035 = vmatpush.msra.mxu0 0.0
    %1036 = vmatpush.msra.mxu0 0.0
    %1037 = vmatpush.msra.mxu0 %v270
    %1038 = vmatpush.msra.mxu0 %v268
    %1039 = vmatpush.msra.mxu0 %v266
    %1040 = vmatpush.msra.mxu0 %v264
    %1041 = vmatpush.msra.mxu0 %v262
    %1042 = vmatpush.msra.mxu0 %v260
    %1043 = vmatpush.msra.mxu0 %v258
    %1044 = vmatpush.msra.mxu0 %v256
    %1045 = vmatmul.f32.gmra.mxu0 %v1007
    %v1046 = vpop.f32.mrf.mxu0
    %v1047 = vadd.f32 0.0, %v1046
    %1048 = vdwg.mxu0
    %v1051 = vrot.slane %v1027, 3
    %v1052 = vrot.slane %v1047, 3
    %v1055 = vadd.f32 %v1001, %v1051
    %v1056 = vadd.f32 %v1003, %v1052
    %v1057 = vxor.u32 %v1055, 2147483648
    %v1058 = vmul.f32 %v1057, 1.442695
    %v1059 = vpow.pop %v1058
    %v1060 = vadd.f32 %v1059, 1.0
    %v1061 = vrcp.pop %v1060
    %v1062 = vmul.f32 %v1060, %v1061
    %v1063 = vsub.f32 1.0, %v1062
    %v1064 = vmul.f32 %v1061, %v1063
    %v1065 = vadd.f32 %v1061, %v1064
    %vm1066 = vweird.f32 %v1060
    %vm1067 = vweird.f32 %v1061
    %vm1068 = vmor %vm1066, %vm1067
    %v1069 = vsel %vm1068, %v1061, %v1065
    %v1070 = vand.u32 2147483647, %v1060
    %vm1071 = vcmp.eq.f32.partialorder %v1070, 8.507059e+37
    %v1072 = vand.u32 %v1060, 2147483648
    %v1073 = vor.u32 1.1754944e-38, %v1072
    %v1074 = vsel %vm1071, %v1073, %v1069
    %v1075 = vmul.f32 1.0, %v1074
    %v1076 = vtanh.pop %v1055
    %v1077 = vxor.u32 %v1056, 2147483648
    %v1078 = vmul.f32 %v1077, 1.442695
    %v1079 = vpow.pop %v1078
    %v1080 = vadd.f32 %v1079, 1.0
    %v1081 = vrcp.pop %v1080
    %v1082 = vmul.f32 %v1080, %v1081
    %v1083 = vsub.f32 1.0, %v1082
    %v1084 = vmul.f32 %v1081, %v1083
    %v1085 = vadd.f32 %v1081, %v1084
    %vm1086 = vweird.f32 %v1080
    %vm1087 = vweird.f32 %v1081
    %vm1088 = vmor %vm1086, %vm1087
    %v1089 = vsel %vm1088, %v1081, %v1085
    %v1090 = vand.u32 2147483647, %v1080
    %vm1091 = vcmp.eq.f32.partialorder %v1090, 8.507059e+37
    %v1092 = vand.u32 %v1080, 2147483648
    %v1093 = vor.u32 1.1754944e-38, %v1092
    %v1094 = vsel %vm1091, %v1093, %v1089
    %v1095 = vmul.f32 1.0, %v1094
    %v1096 = vtanh.pop %v1056
    %v1098 = vrot.slane %v964, 7
    %v1100 = vmul.f32 %v1075, %v1098
    %1102 = vrot.lane.b32.xlu0 %v1076, 64
    %v1103 = vpop.permute.xlu0 %1102
    %v1105 = vmul.f32 %v1075, %v1103
    %1107 = vrot.lane.b32.xlu0 %v1105, 32
    %v1108 = vpop.permute.xlu0 %1107
    %v1110 = vadd.f32 %v1100, %v1108
    %v1112 = vrot.slane %v978, 7
    %v1114 = vmul.f32 %v1095, %v1112
    %1116 = vrot.lane.b32.xlu0 %v1096, 64
    %v1117 = vpop.permute.xlu0 %1116
    %v1119 = vmul.f32 %v1095, %v1117
    %1121 = vrot.lane.b32.xlu0 %v1119, 32
    %v1122 = vpop.permute.xlu0 %1121
    %v1124 = vadd.f32 %v1114, %v1122
    %v1125 = vtanh.pop %v1110
    %1127 = vrot.lane.b32.xlu0 %v1125, 64
    %v1128 = vpop.permute.xlu0 %1127
    %v1130 = vmul.f32 %v1075, %v1128
    %v1131 = vtanh.pop %v1124
    %1133 = vrot.lane.b32.xlu0 %v1131, 64
    %v1134 = vpop.permute.xlu0 %1133
    %v1136 = vmul.f32 %v1095, %v1134
    %1138 = vrot.lane.b32.xlu0 %v1130, 32
    %v1139 = vpop.permute.xlu0 %1138
    %1142 = vrot.lane.b32.xlu0 %v1136, 64
    %v1143 = vpop.permute.xlu0 %1142
    %v1145 = vsel %vm134, %v1139, %v1143
    %vm1146 = vcmask 1047559
    %v1147 = vsel %vm1146, %v273, %v227
    %v1149 = vsel %vm1146, %v563, %v562
    %v1152 = vrot.slane %v1145, 5
    %v1153 = vsel %vm283, %v1152, 0
    %1155 = vmatpush.msra.mxu0 0.0
    %1156 = vmatpush.msra.mxu0 0.0
    %1157 = vmatpush.msra.mxu0 0.0
    %1158 = vmatpush.msra.mxu0 0.0
    %1159 = vmatpush.msra.mxu0 0.0
    %1160 = vmatpush.msra.mxu0 0.0
    %1161 = vmatpush.msra.mxu0 0.0
    %1162 = vmatpush.msra.mxu0 0.0
    %1163 = vmatpush.msra.mxu0 %v269
    %1164 = vmatpush.msra.mxu0 %v267
    %1165 = vmatpush.msra.mxu0 %v265
    %1166 = vmatpush.msra.mxu0 %v263
    %1167 = vmatpush.msra.mxu0 %v261
    %1168 = vmatpush.msra.mxu0 %v259
    %1169 = vmatpush.msra.mxu0 %v257
    %1170 = vmatpush.msra.mxu0 %v255
    %1171 = vmatmul.f32.gmra.mxu0 %v1153
    %v1172 = vpop.f32.mrf.mxu0
    %v1173 = vadd.f32 0.0, %v1172
    %1174 = vdwg.mxu0
    %1175 = vmatpush.msra.mxu0 0.0
    %1176 = vmatpush.msra.mxu0 0.0
    %1177 = vmatpush.msra.mxu0 0.0
    %1178 = vmatpush.msra.mxu0 0.0
    %1179 = vmatpush.msra.mxu0 0.0
    %1180 = vmatpush.msra.mxu0 0.0
    %1181 = vmatpush.msra.mxu0 0.0
    %1182 = vmatpush.msra.mxu0 0.0
    %1183 = vmatpush.msra.mxu0 %v270
    %1184 = vmatpush.msra.mxu0 %v268
    %1185 = vmatpush.msra.mxu0 %v266
    %1186 = vmatpush.msra.mxu0 %v264
    %1187 = vmatpush.msra.mxu0 %v262
    %1188 = vmatpush.msra.mxu0 %v260
    %1189 = vmatpush.msra.mxu0 %v258
    %1190 = vmatpush.msra.mxu0 %v256
    %1191 = vmatmul.f32.gmra.mxu0 %v1153
    %v1192 = vpop.f32.mrf.mxu0
    %v1193 = vadd.f32 0.0, %v1192
    %1194 = vdwg.mxu0
    %v1197 = vrot.slane %v1173, 2
    %v1198 = vrot.slane %v1193, 2
    %v1201 = vadd.f32 %v1147, %v1197
    %v1202 = vadd.f32 %v1149, %v1198
    %v1203 = vxor.u32 %v1201, 2147483648
    %v1204 = vmul.f32 %v1203, 1.442695
    %v1205 = vpow.pop %v1204
    %v1206 = vadd.f32 %v1205, 1.0
    %v1207 = vrcp.pop %v1206
    %v1208 = vmul.f32 %v1206, %v1207
    %v1209 = vsub.f32 1.0, %v1208
    %v1210 = vmul.f32 %v1207, %v1209
    %v1211 = vadd.f32 %v1207, %v1210
    %vm1212 = vweird.f32 %v1206
    %vm1213 = vweird.f32 %v1207
    %vm1214 = vmor %vm1212, %vm1213
    %v1215 = vsel %vm1214, %v1207, %v1211
    %v1216 = vand.u32 2147483647, %v1206
    %vm1217 = vcmp.eq.f32.partialorder %v1216, 8.507059e+37
    %v1218 = vand.u32 %v1206, 2147483648
    %v1219 = vor.u32 1.1754944e-38, %v1218
    %v1220 = vsel %vm1217, %v1219, %v1215
    %v1221 = vmul.f32 1.0, %v1220
    %v1222 = vtanh.pop %v1201
    %v1223 = vxor.u32 %v1202, 2147483648
    %v1224 = vmul.f32 %v1223, 1.442695
    %v1225 = vpow.pop %v1224
    %v1226 = vadd.f32 %v1225, 1.0
    %v1227 = vrcp.pop %v1226
    %v1228 = vmul.f32 %v1226, %v1227
    %v1229 = vsub.f32 1.0, %v1228
    %v1230 = vmul.f32 %v1227, %v1229
    %v1231 = vadd.f32 %v1227, %v1230
    %vm1232 = vweird.f32 %v1226
    %vm1233 = vweird.f32 %v1227
    %vm1234 = vmor %vm1232, %vm1233
    %v1235 = vsel %vm1234, %v1227, %v1231
    %v1236 = vand.u32 2147483647, %v1226
    %vm1237 = vcmp.eq.f32.partialorder %v1236, 8.507059e+37
    %v1238 = vand.u32 %v1226, 2147483648
    %v1239 = vor.u32 1.1754944e-38, %v1238
    %v1240 = vsel %vm1237, %v1239, %v1235
    %v1241 = vmul.f32 1.0, %v1240
    %v1242 = vtanh.pop %v1202
    %v1244 = vrot.slane %v1110, 7
    %v1246 = vmul.f32 %v1221, %v1244
    %1248 = vrot.lane.b32.xlu0 %v1222, 64
    %v1249 = vpop.permute.xlu0 %1248
    %v1251 = vmul.f32 %v1221, %v1249
    %1253 = vrot.lane.b32.xlu0 %v1251, 32
    %v1254 = vpop.permute.xlu0 %1253
    %v1256 = vadd.f32 %v1246, %v1254
    %v1258 = vrot.slane %v1124, 7
    %v1260 = vmul.f32 %v1241, %v1258
    %1262 = vrot.lane.b32.xlu0 %v1242, 64
    %v1263 = vpop.permute.xlu0 %1262
    %v1265 = vmul.f32 %v1241, %v1263
    %1267 = vrot.lane.b32.xlu0 %v1265, 32
    %v1268 = vpop.permute.xlu0 %1267
    %v1270 = vadd.f32 %v1260, %v1268
    %v1271 = vtanh.pop %v1256
    %1273 = vrot.lane.b32.xlu0 %v1271, 64
    %v1274 = vpop.permute.xlu0 %1273
    %v1276 = vmul.f32 %v1221, %v1274
    %v1277 = vtanh.pop %v1270
    %1279 = vrot.lane.b32.xlu0 %v1277, 64
    %v1280 = vpop.permute.xlu0 %1279
    %v1282 = vmul.f32 %v1241, %v1280
    %1284 = vrot.lane.b32.xlu0 %v1276, 32
    %v1285 = vpop.permute.xlu0 %1284
    %1288 = vrot.lane.b32.xlu0 %v1282, 64
    %v1289 = vpop.permute.xlu0 %1288
    %v1291 = vsel %vm134, %v1285, %v1289
    %v1297 = vrot.slane %v1291, 6
    %v1298 = vsel %vm283, %v1297, 0
    %1300 = vmatpush.msra.mxu0 0.0
    %1301 = vmatpush.msra.mxu0 0.0
    %1302 = vmatpush.msra.mxu0 0.0
    %1303 = vmatpush.msra.mxu0 0.0
    %1304 = vmatpush.msra.mxu0 0.0
    %1305 = vmatpush.msra.mxu0 0.0
    %1306 = vmatpush.msra.mxu0 0.0
    %1307 = vmatpush.msra.mxu0 0.0
    %1308 = vmatpush.msra.mxu0 %v269
    %1309 = vmatpush.msra.mxu0 %v267
    %1310 = vmatpush.msra.mxu0 %v265
    %1311 = vmatpush.msra.mxu0 %v263
    %1312 = vmatpush.msra.mxu0 %v261
    %1313 = vmatpush.msra.mxu0 %v259
    %1314 = vmatpush.msra.mxu0 %v257
    %1315 = vmatpush.msra.mxu0 %v255
    %1316 = vmatmul.f32.gmra.mxu0 %v1298
    %v1317 = vpop.f32.mrf.mxu0
    %v1318 = vadd.f32 0.0, %v1317
    %1319 = vdwg.mxu0
    %1320 = vmatpush.msra.mxu0 0.0
    %1321 = vmatpush.msra.mxu0 0.0
    %1322 = vmatpush.msra.mxu0 0.0
    %1323 = vmatpush.msra.mxu0 0.0
    %1324 = vmatpush.msra.mxu0 0.0
    %1325 = vmatpush.msra.mxu0 0.0
    %1326 = vmatpush.msra.mxu0 0.0
    %1327 = vmatpush.msra.mxu0 0.0
    %1328 = vmatpush.msra.mxu0 %v270
    %1329 = vmatpush.msra.mxu0 %v268
    %1330 = vmatpush.msra.mxu0 %v266
    %1331 = vmatpush.msra.mxu0 %v264
    %1332 = vmatpush.msra.mxu0 %v262
    %1333 = vmatpush.msra.mxu0 %v260
    %1334 = vmatpush.msra.mxu0 %v258
    %1335 = vmatpush.msra.mxu0 %v256
    %1336 = vmatmul.f32.gmra.mxu0 %v1298
    %v1337 = vpop.f32.mrf.mxu0
    %v1338 = vadd.f32 0.0, %v1337
    %1339 = vdwg.mxu0
    %v1342 = vrot.slane %v1318, 1
    %v1343 = vrot.slane %v1338, 1
    %v1346 = vadd.f32 %v227, %v1342
    %v1347 = vadd.f32 %v710, %v1343
    %v1348 = vadd.f32 %v273, %v1342
    %v1349 = vadd.f32 %v253, %v1343
    %v1350 = vxor.u32 %v1346, 2147483648
    %v1351 = vxor.u32 %v1348, 2147483648
    %v1352 = vmul.f32 %v1350, 1.442695
    %v1353 = vpow.pop %v1352
    %v1354 = vmul.f32 %v1351, 1.442695
    %v1355 = vpow.pop %v1354
    %v1356 = vadd.f32 %v1353, 1.0
    %v1357 = vadd.f32 %v1355, 1.0
    %v1358 = vrcp.pop %v1356
    %v1359 = vmul.f32 %v1356, %v1358
    %v1360 = vsub.f32 1.0, %v1359
    %v1361 = vmul.f32 %v1358, %v1360
    %v1362 = vadd.f32 %v1358, %v1361
    %vm1363 = vweird.f32 %v1356
    %vm1364 = vweird.f32 %v1358
    %vm1365 = vmor %vm1363, %vm1364
    %v1366 = vsel %vm1365, %v1358, %v1362
    %v1367 = vand.u32 2147483647, %v1356
    %vm1368 = vcmp.eq.f32.partialorder %v1367, 8.507059e+37
    %v1369 = vand.u32 %v1356, 2147483648
    %v1370 = vor.u32 1.1754944e-38, %v1369
    %v1371 = vsel %vm1368, %v1370, %v1366
    %v1372 = vmul.f32 1.0, %v1371
    %v1373 = vrcp.pop %v1357
    %v1374 = vmul.f32 %v1357, %v1373
    %v1375 = vsub.f32 1.0, %v1374
    %v1376 = vmul.f32 %v1373, %v1375
    %v1377 = vadd.f32 %v1373, %v1376
    %vm1378 = vweird.f32 %v1357
    %vm1379 = vweird.f32 %v1373
    %vm1380 = vmor %vm1378, %vm1379
    %v1381 = vsel %vm1380, %v1373, %v1377
    %v1382 = vand.u32 2147483647, %v1357
    %vm1383 = vcmp.eq.f32.partialorder %v1382, 8.507059e+37
    %v1384 = vand.u32 %v1357, 2147483648
    %v1385 = vor.u32 1.1754944e-38, %v1384
    %v1386 = vsel %vm1383, %v1385, %v1381
    %v1387 = vmul.f32 1.0, %v1386
    %v1388 = vtanh.pop %v1346
    %v1389 = vtanh.pop %v1348
    %v1390 = vxor.u32 %v1347, 2147483648
    %v1391 = vxor.u32 %v1349, 2147483648
    %v1392 = vmul.f32 %v1390, 1.442695
    %v1393 = vpow.pop %v1392
    %v1394 = vmul.f32 %v1391, 1.442695
    %v1395 = vpow.pop %v1394
    %v1396 = vadd.f32 %v1393, 1.0
    %v1397 = vadd.f32 %v1395, 1.0
    %v1398 = vrcp.pop %v1396
    %v1399 = vmul.f32 %v1396, %v1398
    %v1400 = vsub.f32 1.0, %v1399
    %v1401 = vmul.f32 %v1398, %v1400
    %v1402 = vadd.f32 %v1398, %v1401
    %vm1403 = vweird.f32 %v1396
    %vm1404 = vweird.f32 %v1398
    %vm1405 = vmor %vm1403, %vm1404
    %v1406 = vsel %vm1405, %v1398, %v1402
    %v1407 = vand.u32 2147483647, %v1396
    %vm1408 = vcmp.eq.f32.partialorder %v1407, 8.507059e+37
    %v1409 = vand.u32 %v1396, 2147483648
    %v1410 = vor.u32 1.1754944e-38, %v1409
    %v1411 = vsel %vm1408, %v1410, %v1406
    %v1412 = vmul.f32 1.0, %v1411
    %v1413 = vrcp.pop %v1397
    %v1414 = vmul.f32 %v1397, %v1413
    %v1415 = vsub.f32 1.0, %v1414
    %v1416 = vmul.f32 %v1413, %v1415
    %v1417 = vadd.f32 %v1413, %v1416
    %vm1418 = vweird.f32 %v1397
    %vm1419 = vweird.f32 %v1413
    %vm1420 = vmor %vm1418, %vm1419
    %v1421 = vsel %vm1420, %v1413, %v1417
    %v1422 = vand.u32 2147483647, %v1397
    %vm1423 = vcmp.eq.f32.partialorder %v1422, 8.507059e+37
    %v1424 = vand.u32 %v1397, 2147483648
    %v1425 = vor.u32 1.1754944e-38, %v1424
    %v1426 = vsel %vm1423, %v1425, %v1421
    %v1427 = vmul.f32 1.0, %v1426
    %v1428 = vtanh.pop %v1347
    %v1429 = vtanh.pop %v1349
    %v1431 = vrot.slane %v1256, 7
    %v1433 = vmul.f32 %v1372, %v1431
    %v1434 = vmul.f32 %v1387, %v1431
    %1437 = vrot.lane.b32.xlu0 %v1388, 64
    %v1438 = vpop.permute.xlu0 %1437
    %1439 = vrot.lane.b32.xlu0 %v1389, 64
    %v1440 = vpop.permute.xlu0 %1439
    %v1443 = vmul.f32 %v1372, %v1438
    %v1444 = vmul.f32 %v1387, %v1440
    %1447 = vrot.lane.b32.xlu0 %v1443, 32
    %v1448 = vpop.permute.xlu0 %1447
    %1449 = vrot.lane.b32.xlu0 %v1444, 32
    %v1450 = vpop.permute.xlu0 %1449
    %v1453 = vadd.f32 %v1433, %v1448
    %v1454 = vadd.f32 %v1434, %v1450
    %v1456 = vrot.slane %v1270, 7
    %v1458 = vmul.f32 %v1412, %v1456
    %v1459 = vmul.f32 %v1427, %v1456
    %1462 = vrot.lane.b32.xlu0 %v1428, 64
    %v1463 = vpop.permute.xlu0 %1462
    %1464 = vrot.lane.b32.xlu0 %v1429, 64
    %v1465 = vpop.permute.xlu0 %1464
    %v1468 = vmul.f32 %v1412, %v1463
    %v1469 = vmul.f32 %v1427, %v1465
    %1472 = vrot.lane.b32.xlu0 %v1468, 32
    %v1473 = vpop.permute.xlu0 %1472
    %1474 = vrot.lane.b32.xlu0 %v1469, 32
    %v1475 = vpop.permute.xlu0 %1474
    %v1478 = vadd.f32 %v1458, %v1473
    %v1479 = vadd.f32 %v1459, %v1475
    %v1480 = vtanh.pop %v1453
    %v1481 = vtanh.pop %v1454
    %1484 = vrot.lane.b32.xlu0 %v1480, 64
    %v1485 = vpop.permute.xlu0 %1484
    %1486 = vrot.lane.b32.xlu0 %v1481, 64
    %v1487 = vpop.permute.xlu0 %1486
    %v1490 = vmul.f32 %v1372, %v1485
    %v1491 = vmul.f32 %v1387, %v1487
    %v1492 = vtanh.pop %v1478
    %v1493 = vtanh.pop %v1479
    %1496 = vrot.lane.b32.xlu0 %v1492, 64
    %v1497 = vpop.permute.xlu0 %1496
    %1498 = vrot.lane.b32.xlu0 %v1493, 64
    %v1499 = vpop.permute.xlu0 %1498
    %v1502 = vmul.f32 %v1412, %v1497
    %v1503 = vmul.f32 %v1427, %v1499
    %1506 = vrot.lane.b32.xlu0 %v1490, 32
    %v1507 = vpop.permute.xlu0 %1506
    %1508 = vrot.lane.b32.xlu0 %v1491, 32
    %v1509 = vpop.permute.xlu0 %1508
    %1514 = vrot.lane.b32.xlu0 %v1502, 64
    %v1515 = vpop.permute.xlu0 %1514
    %1516 = vrot.lane.b32.xlu0 %v1503, 64
    %v1517 = vpop.permute.xlu0 %1516
    %v1520 = vsel %vm134, %v1507, %v1515
    %v1521 = vsel %vm134, %v1509, %v1517
    %v1522 = vld [vmem:[#allocation5] sm:$0xff]
    %v1523 = vld [vmem:[#allocation5 + $0x8] sm:$0xff]
    %v1524 = vld [vmem:[#allocation5 + $0x10] sm:$0xff]
    %v1525 = vld [vmem:[#allocation5 + $0x18] sm:$0xff]
    %v1526 = vld [vmem:[#allocation5 + $0x20] sm:$0xff]
    %v1527 = vld [vmem:[#allocation5 + $0x28] sm:$0xff]
    %v1528 = vld [vmem:[#allocation5 + $0x30] sm:$0xff]
    %v1529 = vld [vmem:[#allocation5 + $0x38] sm:$0xff]
    %v1530 = vld [vmem:[%s9] sm:$0x1]
    %v1532 = vperm.slane %v1530, 0
    %vm1536 = vcmask 1040384
    %v1537 = vrot.slane %v1520, 7
    %v1538 = vrot.slane %v1521, 7
    %v1539 = vsel %vm1536, %v1537, %v1538
    %v1540 = vsel %vm283, %v1539, 0
    %1542 = vmatpush.msra.mxu0 0.0
    %1543 = vmatpush.msra.mxu0 0.0
    %1544 = vmatpush.msra.mxu0 0.0
    %1545 = vmatpush.msra.mxu0 0.0
    %1546 = vmatpush.msra.mxu0 0.0
    %1547 = vmatpush.msra.mxu0 0.0
    %1548 = vmatpush.msra.mxu0 0.0
    %1549 = vmatpush.msra.mxu0 0.0
    %1550 = vmatpush.msra.mxu0 %v1529
    %1551 = vmatpush.msra.mxu0 %v1528
    %1552 = vmatpush.msra.mxu0 %v1527
    %1553 = vmatpush.msra.mxu0 %v1526
    %1554 = vmatpush.msra.mxu0 %v1525
    %1555 = vmatpush.msra.mxu0 %v1524
    %1556 = vmatpush.msra.mxu0 %v1523
    %1557 = vmatpush.msra.mxu0 %v1522
    %1558 = vmatmul.f32.gmra.mxu0 %v1540
    %v1559 = vpop.f32.mrf.mxu0
    %v1560 = vadd.f32 %v1532, %v1559
    %1561 = vdwg.mxu0
    %v1562 = vmax.f32 %v1560, 0.0
    %v1563 = vld [vmem:[%s10] sm:$0x1]
    %v1564 = vld [vmem:[%s11] sm:$0x1]
    %vm1565 = vcmask 1041408
    %v1566 = vsel %vm1565, %v1562, 0.0
    %v1567 = vrot.slane %v1566, 4
    %v1568 = vadd.f32 %v1566, %v1567
    %v1569 = vrot.slane %v1568, 2
    %v1570 = vadd.f32 %v1568, %v1569
    %v1571 = vrot.slane %v1570, 1
    %v1572 = vadd.f32 %v1570, %v1571
    %v1573 = vrcp.pop 2.0
    %v1574 = vmul.f32 2.0, %v1573
    %v1575 = vsub.f32 1.0, %v1574
    %v1576 = vmul.f32 %v1573, %v1575
    %v1577 = vadd.f32 %v1573, %v1576
    %vm1578 = vweird.f32 %v1573
    %v1579 = vsel %vm1578, %v1573, %v1577
    %v1580 = vmul.f32 %v1572, %v1579
    %v1581 = vsub.f32 %v1562, %v1580
    %v1582 = vmul.f32 %v1581, %v1581
    %v1583 = vsel %vm1565, %v1582, 0.0
    %v1584 = vrot.slane %v1583, 4
    %v1585 = vadd.f32 %v1583, %v1584
    %v1586 = vrot.slane %v1585, 2
    %v1587 = vadd.f32 %v1585, %v1586
    %v1588 = vrot.slane %v1587, 1
    %v1589 = vadd.f32 %v1587, %v1588
    %v1590 = vmul.f32 %v1589, %v1579
    %v1592 = vperm.slane %v1563, 0
    %v1594 = vmul.f32 %v1592, %v1581
    %v1595 = vadd.f32 %v1590, 1e-05
    %v1596 = vrsqrt.pop %v1595
    %v1597 = vmul.f32 %v1596, %v1595
    %v1598 = vmul.f32 %v1597, %v1596
    %v1599 = vmul.f32 0.5, %v1598
    %v1600 = vsub.f32 1.5, %v1599
    %v1601 = vmul.f32 %v1596, %v1600
    %vm1602 = vweird.f32 %v1595
    %vm1603 = vweird.f32 %v1596
    %vm1604 = vmor %vm1602, %vm1603
    %v1605 = vsel %vm1604, %v1596, %v1601
    %v1606 = vmul.f32 %v1594, %v1605
    %v1608 = vperm.slane %v1564, 0
    %v1610 = vadd.f32 %v1606, %v1608
    %v1611 = vld [vmem:[%s12] sm:$0xff]
    %v1612 = vld [vmem:[%s12 + $0x8] sm:$0xff]
    %v1613 = vld [vmem:[%s12 + $0x10] sm:$0xff]
    %v1614 = vld [vmem:[%s12 + $0x18] sm:$0xff]
    %v1615 = vld [vmem:[%s12 + $0x20] sm:$0xff]
    %v1616 = vld [vmem:[%s12 + $0x28] sm:$0xff]
    %v1617 = vld [vmem:[%s12 + $0x30] sm:$0xff]
    %v1618 = vld [vmem:[%s12 + $0x38] sm:$0xff]
    %v1619 = vld [vmem:[%s12 + $0x40] sm:$0xff]
    %v1620 = vld [vmem:[%s12 + $0x48] sm:$0xff]
    %v1621 = vld [vmem:[%s12 + $0x50] sm:$0xff]
    %v1622 = vld [vmem:[%s12 + $0x58] sm:$0xff]
    %v1623 = vld [vmem:[%s12 + $0x60] sm:$0xff]
    %v1624 = vld [vmem:[%s12 + $0x68] sm:$0xff]
    %v1625 = vld [vmem:[%s12 + $0x70] sm:$0xff]
    %v1626 = vld [vmem:[%s12 + $0x78] sm:$0xff]
    %v1627 = vld [vmem:[%s13] sm:$0x1]
    %v1629 = vperm.slane %v1627, 0
    %1631 = vmatpush.msra.mxu0 %v1626
    %1632 = vmatpush.msra.mxu0 %v1625
    %1633 = vmatpush.msra.mxu0 %v1624
    %1634 = vmatpush.msra.mxu0 %v1623
    %1635 = vmatpush.msra.mxu0 %v1622
    %1636 = vmatpush.msra.mxu0 %v1621
    %1637 = vmatpush.msra.mxu0 %v1620
    %1638 = vmatpush.msra.mxu0 %v1619
    %1639 = vmatpush.msra.mxu0 %v1618
    %1640 = vmatpush.msra.mxu0 %v1617
    %1641 = vmatpush.msra.mxu0 %v1616
    %1642 = vmatpush.msra.mxu0 %v1615
    %1643 = vmatpush.msra.mxu0 %v1614
    %1644 = vmatpush.msra.mxu0 %v1613
    %1645 = vmatpush.msra.mxu0 %v1612
    %1646 = vmatpush.msra.mxu0 %v1611
    %1647 = vmatmul.f32.gmra.mxu0 %v1610
    %v1648 = vpop.f32.mrf.mxu0
    %v1649 = vadd.f32 %v1629, %v1648
    %1650 = vdwg.mxu0
    %v1651 = vmax.f32 %v1649, 0.0
    %v1652 = vld [vmem:[%s14] sm:$0x1]
    %v1653 = vld [vmem:[%s15] sm:$0x1]
    %vm1654 = vcmask 320512
    %v1655 = vsel %vm1654, %v1651, 0.0
    %v1656 = vrot.slane %v1655, 4
    %v1657 = vadd.f32 %v1655, %v1656
    %v1658 = vrot.slane %v1657, 2
    %v1659 = vadd.f32 %v1657, %v1658
    %v1660 = vrot.slane %v1659, 1
    %v1661 = vadd.f32 %v1659, %v1660
    %v1662 = vmul.f32 %v1661, %v1579
    %v1663 = vsub.f32 %v1651, %v1662
    %v1664 = vmul.f32 %v1663, %v1663
    %v1665 = vsel %vm1654, %v1664, 0.0
    %v1666 = vrot.slane %v1665, 4
    %v1667 = vadd.f32 %v1665, %v1666
    %v1668 = vrot.slane %v1667, 2
    %v1669 = vadd.f32 %v1667, %v1668
    %v1670 = vrot.slane %v1669, 1
    %v1671 = vadd.f32 %v1669, %v1670
    %v1672 = vmul.f32 %v1671, %v1579
    %v1674 = vperm.slane %v1652, 0
    %v1676 = vmul.f32 %v1674, %v1663
    %v1677 = vadd.f32 %v1672, 1e-05
    %v1678 = vrsqrt.pop %v1677
    %v1679 = vmul.f32 %v1678, %v1677
    %v1680 = vmul.f32 %v1679, %v1678
    %v1681 = vmul.f32 0.5, %v1680
    %v1682 = vsub.f32 1.5, %v1681
    %v1683 = vmul.f32 %v1678, %v1682
    %vm1684 = vweird.f32 %v1677
    %vm1685 = vweird.f32 %v1678
    %vm1686 = vmor %vm1684, %vm1685
    %v1687 = vsel %vm1686, %v1678, %v1683
    %v1688 = vmul.f32 %v1676, %v1687
    %v1690 = vperm.slane %v1653, 0
    %v1692 = vadd.f32 %v1688, %v1690
    %v1693 = vld [vmem:[%s16] sm:$0xff]
    %v1694 = vld [vmem:[%s16 + $0x8] sm:$0xff]
    %v1695 = vld [vmem:[%s16 + $0x10] sm:$0xff]
    %v1696 = vld [vmem:[%s16 + $0x18] sm:$0xff]
    %v1697 = vld [vmem:[%s16 + $0x20] sm:$0xff]
    %v1698 = vld [vmem:[%s17] sm:$0x1]
    %v1700 = vperm.slane %v1698, 0
    %vm1702 = vcmask 326656
    %v1704 = vsel %vm1702, %v1692, 0
    %1706 = vmatpush.msra.mxu0 0.0
    %1707 = vmatpush.msra.mxu0 0.0
    %1708 = vmatpush.msra.mxu0 0.0
    %1709 = vmatpush.msra.mxu0 0.0
    %1710 = vmatpush.msra.mxu0 0.0
    %1711 = vmatpush.msra.mxu0 0.0
    %1712 = vmatpush.msra.mxu0 0.0
    %1713 = vmatpush.msra.mxu0 0.0
    %1714 = vmatpush.msra.mxu0 0.0
    %1715 = vmatpush.msra.mxu0 0.0
    %1716 = vmatpush.msra.mxu0 0.0
    %1717 = vmatpush.msra.mxu0 %v1697
    %1718 = vmatpush.msra.mxu0 %v1696
    %1719 = vmatpush.msra.mxu0 %v1695
    %1720 = vmatpush.msra.mxu0 %v1694
    %1721 = vmatpush.msra.mxu0 %v1693
    %1722 = vmatmul.f32.gmra.mxu0 %v1704
    %v1723 = vpop.f32.mrf.mxu0
    %v1724 = vadd.f32 %v1700, %v1723
    %1725 = vdwg.mxu0
    %vm1726 = vcmask 9216
    %1727 = vst.msk [vmem:[#allocation7] sm:$0x3] %vm1726, %v1724
    // Predicated region
    $region82: #{tpu_custom_call.1} parent=1 // pred_check
      _
    $region83: #{tpu_custom_call.1} parent=1 // pred_check_branch
      %1729 = sbr.rel (0) target = $region85
    $region84: #{tpu_custom_call.1} parent=1 // pred_region
      %1731 = vsyncadd [#allocation4], 0
      %s1733 = sshll.u32 [#allocation7], 4
      %s1734 = int_to_ptr.vmem [resolvable:$true] %s1733
      %s1735 = sshll.u32 %s18, 4
      %s1736 = int_to_ptr.hbm [resolvable:$true] %s1735
      %1738 = dma.vmem_to_hbm [thread:$0]  %s1734, 32, %s1736, [#allocation4]
    $region85: #{tpu_custom_call.1} parent=1 // pred_fallthru
      _
    // Predicated region
    $region86: #{tpu_custom_call.1} parent=1 // pred_check
      _
    $region87: #{tpu_custom_call.1} parent=1 // pred_check_branch
      %1740 = sbr.rel (0) target = $region89
    $region88: #{tpu_custom_call.1} parent=1 // pred_region
      %1742 = dma.done [#allocation4], 32
    $region89: #{tpu_custom_call.1} parent=1 // pred_fallthru
      _
    %1743 = vsyncpa [#allocation3], 1
    %1744 = vsyncpa [#allocation6], 1
    %1745 = vsyncpa [#allocation4], 1

</llo_original>
